<compile_context>
chip_gen: v7x
topology: tpu7x:2x2x1
jax: 0.10.0
libtpu: 0.0.40
codegen_flags: <defaults>
</compile_context>

<pallas_src>
import functools

import numpy as np
import jax
import jax.numpy as jnp
from jax import lax
from jax.experimental import pallas as pl
from jax.experimental.pallas import tpu as pltpu


def _round_up(v, m):
    return ((v + m - 1) // m) * m


# ----------------------------------------------------------------------------
# Plain-JAX/numpy glue reproduced from the reference module
# ----------------------------------------------------------------------------
def compute_pooling_at_each_layer(pooling_dim_at_output, num_layers):
    py, px = map(int, pooling_dim_at_output.split('x'))
    pooling_base = np.array([1.0 / px, 1.0 / py, 1.0], dtype=np.float32)
    poolings = []
    for i in range(num_layers):
        pooling = pooling_base / 2 ** (3 - i)
        pooling[-1] = 1.0
        poolings.append(pooling)
    return np.stack(poolings)


# ----------------------------------------------------------------------------
# Pallas kernel: trilinear grid_sample (streamed over S) + fused concat
# ----------------------------------------------------------------------------
def _grid_sample_kernel(coord_ref, img_ref, out_ref, acc_ref, *,
                        Wn, Hn, Bn, Wf, Hf, D, s_tile,
                        c_pre, C, c_post, matmul_dtype):
    """Grid = (N tiles ["parallel"], S tiles ["arbitrary", accumulated]).

    coord_ref: (8, tile_n)       row 0..2 = (x_pixel, y_pixel, batch id);
                                 rows 3.. = fused pre/post passthrough columns.
    img_ref:   (out_pad, s_tile) transposed image slab chunk; channel c lives
                                 at row c_pre + c, flat S index (z, y, x) on lanes.
    out_ref:   (out_pad, tile_n) transposed fused output tile.
    acc_ref:   (out_pad, tile_n) f32 accumulator scratch (persists over S tiles).
    """
    k = pl.program_id(1)

    @pl.when(k == 0)
    def _():
        acc_ref[...] = jnp.zeros_like(acc_ref)

    coords = coord_ref[...]                      # (8, tile_n), nodes on lanes
    x = coords[0:1, :]
    y = coords[1:2, :]
    b = coords[2:3, :]

    # Normalization exactly as in _sample_features (original image dims, eff. batch).
    gx = 2.0 * x / (Wn - 1.0) - 1.0
    gy = 2.0 * y / (Hn - 1.0) - 1.0
    gb = 2.0 * b / (Bn - 1.0) - 1.0

    # grid_sample align_corners=True un-normalization (feature-map dims, true depth).
    ix = (gx + 1.0) * 0.5 * (Wf - 1.0)
    iy = (gy + 1.0) * 0.5 * (Hf - 1.0)
    iz = (gb + 1.0) * 0.5 * (D - 1.0)

    x0 = jnp.floor(ix)
    y0 = jnp.floor(iy)
    z0 = jnp.floor(iz)
    fx = ix - x0
    fy = iy - y0
    fz = iz - z0
    x0i = x0.astype(jnp.int32)
    y0i = y0.astype(jnp.int32)
    z0i = z0.astype(jnp.int32)

    tile_n = coord_ref.shape[1]
    sub = lax.broadcasted_iota(jnp.int32, (s_tile, tile_n), 0)   # local S row index
    base = k * s_tile                                            # global offset of this S tile

    # Accumulate the 8 trilinear corners into one weighted one-hot selection
    # matrix (S on sublanes, N on lanes); one MXU matmul then does gather+interp.
    sel = jnp.zeros((s_tile, tile_n), jnp.float32)
    for dz in (0, 1):
        wz = fz if dz else (1.0 - fz)
        zi = z0i + dz
        for dy in (0, 1):
            wy = fy if dy else (1.0 - fy)
            yi = y0i + dy
            for dx in (0, 1):
                wx = fx if dx else (1.0 - fx)
                xi = x0i + dx
                valid = ((xi >= 0) & (xi < Wf) & (yi >= 0) & (yi < Hf)
                         & (zi >= 0) & (zi < D))
                w = jnp.where(valid, wx * wy * wz, 0.0)                  # (1, tile_n)
                flat = (jnp.clip(zi, 0, D - 1) * (Hf * Wf)
                        + jnp.clip(yi, 0, Hf - 1) * Wf
                        + jnp.clip(xi, 0, Wf - 1)) - base                # (1, tile_n), local
                sel = sel + jnp.where(sub == flat, w, 0.0)

    # (out_pad, s_tile) @ (s_tile, tile_n) -> (out_pad, tile_n), f32 accumulation.
    acc_ref[...] += jnp.dot(img_ref[...].astype(matmul_dtype),
                            sel.astype(matmul_dtype),
                            preferred_element_type=jnp.float32)

    @pl.when(k == pl.num_programs(1) - 1)
    def _():
        res = acc_ref[...]                        # (out_pad, tile_n)
        if c_pre or c_post:
            # Fused concatenation: passthrough columns ride in coordinate rows
            # 3..7 and are dropped into their output rows with a few selects.
            row = lax.broadcasted_iota(jnp.int32, res.shape, 0)
            for j in range(c_pre):
                res = jnp.where(row == j, coords[3 + j:4 + j, :], res)
            for j in range(c_post):
                res = jnp.where(row == c_pre + C + j,
                                coords[3 + c_pre + j:4 + c_pre + j, :], res)
        out_ref[...] = res.astype(out_ref.dtype)


# ----------------------------------------------------------------------------
# VMEM budgeting / tile selection (per hardware generation)
# ----------------------------------------------------------------------------
def _vmem_budget_and_limit():
    """Per-TC working-set budget and scoped-VMEM limit, derived from hardware."""
    cap = None
    try:
        cap = int(getattr(pltpu.get_tpu_info(), "vmem_capacity_bytes", 0)) or None
    except Exception:
        cap = None
    if cap is None:
        cap = 64 * 1024 * 1024   # conservative: v7x per-core physical VMEM
    budget = max(12 << 20, min(cap // 3, 40 << 20))
    limit = max(budget + (4 << 20), min(cap - (8 << 20), budget + (16 << 20)))
    return budget, limit


def _choose_tiles(n_nodes, S, out_pad, slab_itemsize, budget_bytes):
    """Largest (tile_n, s_tile) whose per-step working set fits the budget."""
    s_full = _round_up(max(S, 128), 128)
    n_full = _round_up(max(n_nodes, 128), 128)
    n_cands = [c for c in (2048, 1024, 512, 256, 128) if c <= n_full] or [128]
    s_cands = [c for c in (4096, 2048, 1024, 512, 256, 128) if c <= s_full] or [128]

    def need(tile_n, s_tile):
        return (2 * 8 * tile_n * 4                        # coord block (double-buffered)
                + 2 * out_pad * s_tile * slab_itemsize    # image-slab block (double-buffered)
                + 2 * s_tile * tile_n * 4                 # sel one-hot + temporaries
                + s_tile * tile_n * slab_itemsize         # sel cast for the MXU
                + 3 * out_pad * tile_n * 4)               # acc scratch + out block (x2)

    for tile_n in n_cands:          # prioritize tile_n (amortizes per-step overhead
        for s_tile in s_cands:      # + coordinate math), then the S chunk size.
            if need(tile_n, s_tile) <= budget_bytes:
                return tile_n, s_tile
    return 128, 128


# ----------------------------------------------------------------------------
# Wrapper: [pre | grid_sample(image_feat) | post] in a single Pallas call
# ----------------------------------------------------------------------------
def _grid_sample_fused(x_pix, y_pix, b, image_feat, width, height, batch_size,
                       pre=None, post=None, image_sample_mode='bilinear',
                       matmul_dtype=jnp.float32):
    # TODO(synk): only 'bilinear' (trilinear) grid_sample mode is implemented.
    assert image_sample_mode == 'bilinear'
    B, C, Hf, Wf = map(int, image_feat.shape)
    Beff = batch_size if batch_size > 1 else 2
    N = int(x_pix.shape[0])

    c_pre = 0 if pre is None else int(pre.shape[1])
    c_post = 0 if post is None else int(post.shape[1])
    fuse_pass = (c_pre + c_post) <= 5          # fits in spare coordinate rows 3..7
    c_pre_k = c_pre if fuse_pass else 0
    c_post_k = c_post if fuse_pass else 0
    n_out_k = c_pre_k + C + c_post_k
    out_pad = _round_up(max(n_out_k, 16), 16)  # sublane dim; 16 is bf16-tiling safe

    slab_dtype = matmul_dtype
    slab_itemsize = jnp.dtype(slab_dtype).itemsize
    budget, vmem_limit = _vmem_budget_and_limit()
    S = B * Hf * Wf
    tile_n, s_tile = _choose_tiles(N, S, out_pad, slab_itemsize, budget)
    n_pad = _round_up(max(N, tile_n), tile_n)
    s_pad = _round_up(max(S, s_tile), s_tile)

    # Lane-dense coordinate / passthrough block (nodes on lanes).
    coords = jnp.zeros((8, n_pad), jnp.float32)
    coords = coords.at[0, :N].set(x_pix.astype(jnp.float32))
    coords = coords.at[1, :N].set(y_pix.astype(jnp.float32))
    coords = coords.at[2, :N].set(b.astype(jnp.float32))
    if fuse_pass and c_pre:
        coords = coords.at[3:3 + c_pre, :N].set(jnp.transpose(pre.astype(jnp.float32)))
    if fuse_pass and c_post:
        coords = coords.at[3 + c_pre:3 + c_pre + c_post, :N].set(
            jnp.transpose(post.astype(jnp.float32)))

    # Transposed image slab: channel rows pre-placed at their output row offset,
    # flat S = (depth, H, W) on lanes.
    img_flat = jnp.transpose(image_feat, (1, 0, 2, 3)).reshape(C, S)
    img_slab = jnp.zeros((out_pad, s_pad), slab_dtype)
    img_slab = img_slab.at[c_pre_k:c_pre_k + C, :S].set(img_flat.astype(slab_dtype))

    kernel = functools.partial(
        _grid_sample_kernel,
        Wn=float(width), Hn=float(height), Bn=float(Beff),
        Wf=Wf, Hf=Hf, D=B, s_tile=s_tile,
        c_pre=c_pre_k, C=C, c_post=c_post_k,
        matmul_dtype=matmul_dtype)

    grid = (n_pad // tile_n, s_pad // s_tile)
    out_t = pl.pallas_call(
        kernel,
        out_shape=jax.ShapeDtypeStruct((out_pad, n_pad), jnp.float32),
        grid_spec=pltpu.PrefetchScalarGridSpec(
            num_scalar_prefetch=0,
            grid=grid,
            in_specs=[
                pl.BlockSpec((8, tile_n), lambda i, k: (0, i)),
                pl.BlockSpec((out_pad, s_tile), lambda i, k: (0, k)),
            ],
            out_specs=pl.BlockSpec((out_pad, tile_n), lambda i, k: (0, i)),
            scratch_shapes=[pltpu.VMEM((out_pad, tile_n), jnp.float32)],
        ),
        compiler_params=pltpu.CompilerParams(
            dimension_semantics=("parallel", "arbitrary"),
            vmem_limit_bytes=int(vmem_limit)),
        cost_estimate=pl.CostEstimate(
            flops=2 * out_pad * s_pad * n_pad,
            transcendentals=0,
            bytes_accessed=int(4 * 8 * n_pad
                               + slab_itemsize * out_pad * s_pad * (n_pad // tile_n)
                               + 4 * out_pad * n_pad)),
    )(coords, img_slab)

    fused = jnp.transpose(out_t[:n_out_k, :N])        # (N, n_out_k)
    if fuse_pass:
        return fused
    # Wide passthroughs that do not fit in the coordinate block: concat outside.
    parts = []
    if c_pre:
        parts.append(pre.astype(jnp.float32))
    parts.append(fused)
    if c_post:
        parts.append(post.astype(jnp.float32))
    return jnp.concatenate(parts, axis=1) if len(parts) > 1 else fused


# ----------------------------------------------------------------------------
# Module-level functions matching the reference semantics
# ----------------------------------------------------------------------------
def _sample_features(x, y, b, image_feat, width, height, batch_size,
                     image_sample_mode='bilinear', matmul_dtype=jnp.float32):
    return _grid_sample_fused(x, y, b, image_feat, width, height, batch_size,
                              image_sample_mode=image_sample_mode,
                              matmul_dtype=matmul_dtype)


def _node_coords(data):
    pos = data['pos']
    batch = data.get('batch', None)
    if batch is None or batch.shape[0] != pos.shape[0]:
        batch = jnp.zeros((pos.shape[0],), dtype=jnp.int32)
        data['batch'] = batch
    W = float(data['width'][0])
    H = float(data['height'][0])
    return pos[:, 0] * W, pos[:, 1] * H, batch.astype(jnp.float32), W, H


def sample_features(data, image_feat, image_sample_mode='bilinear',
                    matmul_dtype=jnp.float32):
    x, y, b, W, H = _node_coords(data)
    return _sample_features(x, y, b, image_feat, W, H, int(image_feat.shape[0]),
                            image_sample_mode, matmul_dtype=matmul_dtype)


def sampling_skip(data, image_feat, extra_post=None, matmul_dtype=jnp.float32):
    """cat(data.x, grid_sample(image_feat)) — optionally also fusing a trailing cat."""
    x, y, b, W, H = _node_coords(data)
    return _grid_sample_fused(x, y, b, image_feat, W, H, int(image_feat.shape[0]),
                              pre=data['x'], post=extra_post,
                              matmul_dtype=matmul_dtype)


# ----------------------------------------------------------------------------
# Net (sampling-skip portion of the forward pass)
# ----------------------------------------------------------------------------
class Net:
    def __init__(self, args, height, width, matmul_dtype=jnp.float32):
        channels = [1, int(args.base_width * 32), int(args.after_pool_width * 64),
                    int(args.net_stem_width * 128), int(args.net_stem_width * 128),
                    int(args.net_stem_width * 128)]
        self.use_image = args.use_image
        self.num_scales = args.num_scales
        self.num_classes = dict(dsec=2, ncaltech101=100).get(args.dataset, 2)
        self.out_channels_cnn = [256, 256] if args.use_image else []
        output_channels = channels[1:]
        self.out_channels = output_channels[-2:]
        self.matmul_dtype = matmul_dtype

        poolings = compute_pooling_at_each_layer(args.pooling_dim_at_output, num_layers=4)
        self.poolings = poolings
        self.max_vals_for_cartesian = 2 * poolings[:, :2].max(-1)
        self.strides = np.ceil(poolings[-2:, 1] * height).astype('int32').tolist()
        self.strides = self.strides[-self.num_scales:]
        self.effective_radius = 2 * float(int(args.radius * width + 2) / width)
        # TODO(synk): HookModule (CNN backbone), EV_TGN (event-graph construction),
        # Layer (graph-conv blocks), Pooling and Cartesian edge-attr transforms are
        # external modules whose definitions are not part of the reference source;
        # only the sampling-skip hot path (grid_sample of image features at event
        # nodes + feature concatenation) is implemented as a Pallas kernel.

    def forward(self, data, image_feat):
        rel_delta = data['pos'][:, :2]
        if self.use_image:
            # Single fused Pallas call:
            #   data.x = cat(data.x, grid_sample(image_feat[0])); data.x = cat(data.x, rel_delta)
            data['x'] = sampling_skip(data, image_feat[0], extra_post=rel_delta,
                                      matmul_dtype=self.matmul_dtype)
            data['skipped'] = True
            data['num_image_channels'] = int(image_feat[0].shape[1])
        else:
            data['x'] = jnp.concatenate((data['x'], rel_delta), axis=1)
        return data['x']


# ----------------------------------------------------------------------------
# Pure-numpy reference for the grid_sample hot path (for correctness check)
# ----------------------------------------------------------------------------
def _sample_features_ref(x, y, b, image_feat, width, height, batch_size):
    B, C, Hf, Wf = image_feat.shape
    Beff = batch_size if batch_size > 1 else 2
    x = np.asarray(x, np.float64)
    y = np.asarray(y, np.float64)
    b = np.asarray(b, np.float64)
    feat = np.asarray(image_feat, np.float64)
    gx = 2 * x / (width - 1) - 1
    gy = 2 * y / (height - 1) - 1
    gb = 2 * b / (Beff - 1) - 1
    ix = (gx + 1) / 2 * (Wf - 1)
    iy = (gy + 1) / 2 * (Hf - 1)
    iz = (gb + 1) / 2 * (B - 1)
    x0 = np.floor(ix).astype(np.int64)
    y0 = np.floor(iy).astype(np.int64)
    z0 = np.floor(iz).astype(np.int64)
    fx, fy, fz = ix - x0, iy - y0, iz - z0
    out = np.zeros((x.shape[0], C), np.float64)
    for dz in (0, 1):
        for dy in (0, 1):
            for dx in (0, 1):
                xi, yi, zi = x0 + dx, y0 + dy, z0 + dz
                w = ((fx if dx else 1 - fx) * (fy if dy else 1 - fy)
                     * (fz if dz else 1 - fz))
                valid = ((xi >= 0) & (xi < Wf) & (yi >= 0) & (yi < Hf)
                         & (zi >= 0) & (zi < B))
                v = feat[np.clip(zi, 0, B - 1), :,
                         np.clip(yi, 0, Hf - 1), np.clip(xi, 0, Wf - 1)]   # (N, C)
                out += (w * valid)[:, None] * v
    return out.astype(np.float32)


# ----------------------------------------------------------------------------
# Main
# ----------------------------------------------------------------------------
if __name__ == "__main__":
    class Args:
        base_width = 0.25
        after_pool_width = 0.25
        net_stem_width = 0.25
        use_image = True
        num_scales = 2
        dataset = 'dsec'
        pooling_dim_at_output = '5x7'
        radius = 0.01
        batch_size = 2
        pooling_aggr = 'max'
        keep_temporal_ordering = False
        img_net = 'resnet18'

    H_img, W_img = 16, 16      # original image resolution
    B = 2                      # batch size
    N = 64                     # number of event nodes
    C0 = 8                     # feature channels at scale 0 (int(base_width * 32))

    key = jax.random.PRNGKey(0)
    k_pos, k_x, k_feat, k_batch = jax.random.split(key, 4)

    pos = jax.random.uniform(k_pos, (N, 3), jnp.float32)          # normalized (x, y, t)
    x_nodes = jax.random.normal(k_x, (N, 1), jnp.float32)         # channels[0] == 1
    batch = (jax.random.uniform(k_batch, (N,)) > 0.5).astype(jnp.int32)  # per-node batch id
    image_feat0 = jax.random.normal(k_feat, (B, C0, H_img // 2, W_img // 2), jnp.float32)

    data = dict(x=x_nodes, pos=pos, batch=batch,
                width=np.array([W_img], np.float32),
                height=np.array([H_img], np.float32))

    net = Net(Args(), height=H_img, width=W_img)
    out = net.forward(data, [image_feat0])
    out = jax.block_until_ready(out)

    # numpy reference for the trilinear grid_sample
    ref = _sample_features_ref(np.asarray(pos[:, 0]) * W_img,
                               np.asarray(pos[:, 1]) * H_img,
                               np.asarray(batch, np.float32),
                               image_feat0, float(W_img), float(H_img), B)

    def fresh_data():
        return dict(x=x_nodes, pos=pos, batch=batch,
                    width=np.array([W_img], np.float32),
                    height=np.array([H_img], np.float32))

    # f32 MXU path: strict tolerance (matches PyTorch grid_sample numerics).
    sampled_f32 = jax.block_until_ready(sample_features(fresh_data(), image_feat0))
    assert np.allclose(np.asarray(sampled_f32), ref, atol=1e-4, rtol=1e-4), \
        "Pallas grid_sample (f32) mismatch vs reference"

    # bf16 MXU path (perf option): looser tolerance (~8-bit mantissa weights).
    sampled_bf16 = jax.block_until_ready(
        sample_features(fresh_data(), image_feat0, matmul_dtype=jnp.bfloat16))
    assert np.allclose(np.asarray(sampled_bf16), ref, atol=8e-2, rtol=5e-2), \
        "Pallas grid_sample (bf16) mismatch vs reference"

    # Fused forward output must equal cat(x_nodes, sampled, rel_delta).
    assert out.shape == (N, 1 + C0 + 2), out.shape
    fused_ref = np.concatenate([np.asarray(x_nodes), ref, np.asarray(pos[:, :2])], axis=1)
    assert np.allclose(np.asarray(out), fused_ref, atol=1e-4, rtol=1e-4), \
        "Fused sampling_skip + rel_delta concat mismatch vs reference"
    print("KERNEL_OK")
</pallas_src>

<mosaic_0001>
module attributes {stable_mosaic.version = 11 : i64} {
  func.func @_grid_sample_kernel(%arg0: i32, %arg1: i32, %arg2: memref<8x128xf32, #tpu.memory_space<vmem>>, %arg3: memref<16x128xf32, #tpu.memory_space<vmem>>, %arg4: memref<16x128xf32, #tpu.memory_space<vmem>>, %arg5: memref<16x128xf32, #tpu.memory_space<vmem>>) attributes {dimension_semantics = [#tpu.dimension_semantics<parallel>, #tpu.dimension_semantics<arbitrary>], iteration_bounds = array<i64: 1, 1>, scalar_prefetch = 0 : i64, scratch_operands = 1 : i64, tpu.core_type = #tpu.core_type<tc>, window_params = [{transform_indices = @transform_0, window_bounds = array<i64: 8, 128>}, {transform_indices = @transform_1, window_bounds = array<i64: 16, 128>}, {transform_indices = @transform_2, window_bounds = array<i64: 16, 128>}]} {
    %c0_i32 = arith.constant 0 : i32
    %0 = arith.cmpi eq, %arg1, %c0_i32 : i32
    %1 = arith.extui %0 : i1 to i32
    %c0_i32_0 = arith.constant 0 : i32
    %2 = arith.cmpi ne, %1, %c0_i32_0 : i32
    scf.if %2 {
      %cst_173 = arith.constant 0.000000e+00 : f32
      %489 = vector.broadcast %cst_173 : f32 to vector<16x128xf32>
      %c0_174 = arith.constant 0 : index
      %c0_175 = arith.constant 0 : index
      %490 = vector.load %arg5[%c0_174, %c0_175] : memref<16x128xf32, #tpu.memory_space<vmem>>, vector<16x128xf32>
      tpu.vector_store %arg5[%c0_174, %c0_175], %489 {strides = array<i32>} : memref<16x128xf32, #tpu.memory_space<vmem>>, vector<16x128xf32>,
    } else {
    }
    %c0 = arith.constant 0 : index
    %c0_1 = arith.constant 0 : index
    %3 = vector.load %arg2[%c0, %c0_1] : memref<8x128xf32, #tpu.memory_space<vmem>>, vector<8x128xf32>
    %4 = vector.extract_strided_slice %3 {offsets = [0, 0], sizes = [1, 128], strides = [1, 1]} : vector<8x128xf32> to vector<1x128xf32>
    %5 = vector.extract_strided_slice %3 {offsets = [1, 0], sizes = [1, 128], strides = [1, 1]} : vector<8x128xf32> to vector<1x128xf32>
    %6 = vector.extract_strided_slice %3 {offsets = [2, 0], sizes = [1, 128], strides = [1, 1]} : vector<8x128xf32> to vector<1x128xf32>
    %cst = arith.constant 2.000000e+00 : f32
    %7 = vector.broadcast %cst : f32 to vector<1x128xf32>
    %8 = arith.mulf %7, %4 : vector<1x128xf32>
    %cst_2 = arith.constant 1.500000e+01 : f32
    %9 = vector.broadcast %cst_2 : f32 to vector<1x128xf32>
    %10 = arith.divf %8, %9 : vector<1x128xf32>
    %cst_3 = arith.constant 1.000000e+00 : f32
    %11 = vector.broadcast %cst_3 : f32 to vector<1x128xf32>
    %12 = arith.subf %10, %11 : vector<1x128xf32>
    %cst_4 = arith.constant 2.000000e+00 : f32
    %13 = vector.broadcast %cst_4 : f32 to vector<1x128xf32>
    %14 = arith.mulf %13, %5 : vector<1x128xf32>
    %cst_5 = arith.constant 1.500000e+01 : f32
    %15 = vector.broadcast %cst_5 : f32 to vector<1x128xf32>
    %16 = arith.divf %14, %15 : vector<1x128xf32>
    %cst_6 = arith.constant 1.000000e+00 : f32
    %17 = vector.broadcast %cst_6 : f32 to vector<1x128xf32>
    %18 = arith.subf %16, %17 : vector<1x128xf32>
    %cst_7 = arith.constant 2.000000e+00 : f32
    %19 = vector.broadcast %cst_7 : f32 to vector<1x128xf32>
    %20 = arith.mulf %19, %6 : vector<1x128xf32>
    %cst_8 = arith.constant 1.000000e+00 : f32
    %21 = vector.broadcast %cst_8 : f32 to vector<1x128xf32>
    %22 = arith.divf %20, %21 : vector<1x128xf32>
    %cst_9 = arith.constant 1.000000e+00 : f32
    %23 = vector.broadcast %cst_9 : f32 to vector<1x128xf32>
    %24 = arith.subf %22, %23 : vector<1x128xf32>
    %cst_10 = arith.constant 1.000000e+00 : f32
    %25 = vector.broadcast %cst_10 : f32 to vector<1x128xf32>
    %26 = arith.addf %12, %25 : vector<1x128xf32>
    %cst_11 = arith.constant 5.000000e-01 : f32
    %27 = vector.broadcast %cst_11 : f32 to vector<1x128xf32>
    %28 = arith.mulf %26, %27 : vector<1x128xf32>
    %cst_12 = arith.constant 7.000000e+00 : f32
    %29 = vector.broadcast %cst_12 : f32 to vector<1x128xf32>
    %30 = arith.mulf %28, %29 : vector<1x128xf32>
    %cst_13 = arith.constant 1.000000e+00 : f32
    %31 = vector.broadcast %cst_13 : f32 to vector<1x128xf32>
    %32 = arith.addf %18, %31 : vector<1x128xf32>
    %cst_14 = arith.constant 5.000000e-01 : f32
    %33 = vector.broadcast %cst_14 : f32 to vector<1x128xf32>
    %34 = arith.mulf %32, %33 : vector<1x128xf32>
    %cst_15 = arith.constant 7.000000e+00 : f32
    %35 = vector.broadcast %cst_15 : f32 to vector<1x128xf32>
    %36 = arith.mulf %34, %35 : vector<1x128xf32>
    %cst_16 = arith.constant 1.000000e+00 : f32
    %37 = vector.broadcast %cst_16 : f32 to vector<1x128xf32>
    %38 = arith.addf %24, %37 : vector<1x128xf32>
    %cst_17 = arith.constant 5.000000e-01 : f32
    %39 = vector.broadcast %cst_17 : f32 to vector<1x128xf32>
    %40 = arith.mulf %38, %39 : vector<1x128xf32>
    %cst_18 = arith.constant 1.000000e+00 : f32
    %41 = vector.broadcast %cst_18 : f32 to vector<1x128xf32>
    %42 = arith.mulf %40, %41 : vector<1x128xf32>
    %43 = math.floor %30 : vector<1x128xf32>
    %44 = math.floor %36 : vector<1x128xf32>
    %45 = math.floor %42 : vector<1x128xf32>
    %46 = arith.subf %30, %43 : vector<1x128xf32>
    %47 = arith.subf %36, %44 : vector<1x128xf32>
    %48 = arith.subf %42, %45 : vector<1x128xf32>
    %49 = arith.fptosi %43 : vector<1x128xf32> to vector<1x128xi32>
    %50 = arith.fptosi %44 : vector<1x128xf32> to vector<1x128xi32>
    %51 = arith.fptosi %45 : vector<1x128xf32> to vector<1x128xi32>
    %52 = tpu.iota {dimensions = array<i32: 0>} : vector<128x128xi32>
    %c128_i32 = arith.constant 128 : i32
    %53 = arith.muli %arg1, %c128_i32 : i32
    %cst_19 = arith.constant 0.000000e+00 : f32
    %54 = vector.broadcast %cst_19 : f32 to vector<128x128xf32>
    %cst_20 = arith.constant 1.000000e+00 : f32
    %55 = vector.broadcast %cst_20 : f32 to vector<1x128xf32>
    %56 = arith.subf %55, %48 : vector<1x128xf32>
    %c0_i32_21 = arith.constant 0 : i32
    %57 = vector.broadcast %c0_i32_21 : i32 to vector<1x128xi32>
    %58 = arith.addi %51, %57 : vector<1x128xi32>
    %cst_22 = arith.constant 1.000000e+00 : f32
    %59 = vector.broadcast %cst_22 : f32 to vector<1x128xf32>
    %60 = arith.subf %59, %47 : vector<1x128xf32>
    %c0_i32_23 = arith.constant 0 : i32
    %61 = vector.broadcast %c0_i32_23 : i32 to vector<1x128xi32>
    %62 = arith.addi %50, %61 : vector<1x128xi32>
    %cst_24 = arith.constant 1.000000e+00 : f32
    %63 = vector.broadcast %cst_24 : f32 to vector<1x128xf32>
    %64 = arith.subf %63, %46 : vector<1x128xf32>
    %c0_i32_25 = arith.constant 0 : i32
    %65 = vector.broadcast %c0_i32_25 : i32 to vector<1x128xi32>
    %66 = arith.addi %49, %65 : vector<1x128xi32>
    %c0_i32_26 = arith.constant 0 : i32
    %67 = vector.broadcast %c0_i32_26 : i32 to vector<1x128xi32>
    %68 = arith.cmpi sge, %66, %67 : vector<1x128xi32>
    %c8_i32 = arith.constant 8 : i32
    %69 = vector.broadcast %c8_i32 : i32 to vector<1x128xi32>
    %70 = arith.cmpi slt, %66, %69 : vector<1x128xi32>
    %71 = arith.andi %68, %70 : vector<1x128xi1>
    %c0_i32_27 = arith.constant 0 : i32
    %72 = vector.broadcast %c0_i32_27 : i32 to vector<1x128xi32>
    %73 = arith.cmpi sge, %62, %72 : vector<1x128xi32>
    %74 = arith.andi %71, %73 : vector<1x128xi1>
    %c8_i32_28 = arith.constant 8 : i32
    %75 = vector.broadcast %c8_i32_28 : i32 to vector<1x128xi32>
    %76 = arith.cmpi slt, %62, %75 : vector<1x128xi32>
    %77 = arith.andi %74, %76 : vector<1x128xi1>
    %c0_i32_29 = arith.constant 0 : i32
    %78 = vector.broadcast %c0_i32_29 : i32 to vector<1x128xi32>
    %79 = arith.cmpi sge, %58, %78 : vector<1x128xi32>
    %80 = arith.andi %77, %79 : vector<1x128xi1>
    %c2_i32 = arith.constant 2 : i32
    %81 = vector.broadcast %c2_i32 : i32 to vector<1x128xi32>
    %82 = arith.cmpi slt, %58, %81 : vector<1x128xi32>
    %83 = arith.andi %80, %82 : vector<1x128xi1>
    %84 = arith.mulf %64, %60 : vector<1x128xf32>
    %85 = arith.mulf %84, %56 : vector<1x128xf32>
    %cst_30 = arith.constant 0.000000e+00 : f32
    %86 = vector.broadcast %cst_30 : f32 to vector<1x128xf32>
    %87 = arith.select %83, %85, %86 : vector<1x128xi1>, vector<1x128xf32>
    %c0_i32_31 = arith.constant 0 : i32
    %c1_i32 = arith.constant 1 : i32
    %88 = vector.broadcast %c0_i32_31 : i32 to vector<1x128xi32>
    %89 = arith.maxsi %88, %58 : vector<1x128xi32>
    %90 = vector.broadcast %c1_i32 : i32 to vector<1x128xi32>
    %91 = arith.minsi %90, %89 : vector<1x128xi32>
    %c64_i32 = arith.constant 64 : i32
    %92 = vector.broadcast %c64_i32 : i32 to vector<1x128xi32>
    %93 = arith.muli %91, %92 : vector<1x128xi32>
    %c0_i32_32 = arith.constant 0 : i32
    %c7_i32 = arith.constant 7 : i32
    %94 = vector.broadcast %c0_i32_32 : i32 to vector<1x128xi32>
    %95 = arith.maxsi %94, %62 : vector<1x128xi32>
    %96 = vector.broadcast %c7_i32 : i32 to vector<1x128xi32>
    %97 = arith.minsi %96, %95 : vector<1x128xi32>
    %c8_i32_33 = arith.constant 8 : i32
    %98 = vector.broadcast %c8_i32_33 : i32 to vector<1x128xi32>
    %99 = arith.muli %97, %98 : vector<1x128xi32>
    %100 = arith.addi %93, %99 : vector<1x128xi32>
    %c0_i32_34 = arith.constant 0 : i32
    %c7_i32_35 = arith.constant 7 : i32
    %101 = vector.broadcast %c0_i32_34 : i32 to vector<1x128xi32>
    %102 = arith.maxsi %101, %66 : vector<1x128xi32>
    %103 = vector.broadcast %c7_i32_35 : i32 to vector<1x128xi32>
    %104 = arith.minsi %103, %102 : vector<1x128xi32>
    %105 = arith.addi %100, %104 : vector<1x128xi32>
    %106 = vector.broadcast %53 : i32 to vector<1x128xi32>
    %107 = arith.subi %105, %106 : vector<1x128xi32>
    %108 = vector.broadcast %107 : vector<1x128xi32> to vector<128x128xi32>
    %109 = arith.cmpi eq, %52, %108 : vector<128x128xi32>
    %cst_36 = arith.constant 0.000000e+00 : f32
    %110 = vector.shape_cast %87 : vector<1x128xf32> to vector<1x128xf32>
    %111 = vector.broadcast %110 : vector<1x128xf32> to vector<128x128xf32>
    %112 = vector.broadcast %cst_36 : f32 to vector<128x128xf32>
    %113 = arith.select %109, %111, %112 : vector<128x128xi1>, vector<128x128xf32>
    %114 = arith.addf %54, %113 : vector<128x128xf32>
    %c1_i32_37 = arith.constant 1 : i32
    %115 = vector.broadcast %c1_i32_37 : i32 to vector<1x128xi32>
    %116 = arith.addi %49, %115 : vector<1x128xi32>
    %c0_i32_38 = arith.constant 0 : i32
    %117 = vector.broadcast %c0_i32_38 : i32 to vector<1x128xi32>
    %118 = arith.cmpi sge, %116, %117 : vector<1x128xi32>
    %c8_i32_39 = arith.constant 8 : i32
    %119 = vector.broadcast %c8_i32_39 : i32 to vector<1x128xi32>
    %120 = arith.cmpi slt, %116, %119 : vector<1x128xi32>
    %121 = arith.andi %118, %120 : vector<1x128xi1>
    %c0_i32_40 = arith.constant 0 : i32
    %122 = vector.broadcast %c0_i32_40 : i32 to vector<1x128xi32>
    %123 = arith.cmpi sge, %62, %122 : vector<1x128xi32>
    %124 = arith.andi %121, %123 : vector<1x128xi1>
    %c8_i32_41 = arith.constant 8 : i32
    %125 = vector.broadcast %c8_i32_41 : i32 to vector<1x128xi32>
    %126 = arith.cmpi slt, %62, %125 : vector<1x128xi32>
    %127 = arith.andi %124, %126 : vector<1x128xi1>
    %c0_i32_42 = arith.constant 0 : i32
    %128 = vector.broadcast %c0_i32_42 : i32 to vector<1x128xi32>
    %129 = arith.cmpi sge, %58, %128 : vector<1x128xi32>
    %130 = arith.andi %127, %129 : vector<1x128xi1>
    %c2_i32_43 = arith.constant 2 : i32
    %131 = vector.broadcast %c2_i32_43 : i32 to vector<1x128xi32>
    %132 = arith.cmpi slt, %58, %131 : vector<1x128xi32>
    %133 = arith.andi %130, %132 : vector<1x128xi1>
    %134 = arith.mulf %46, %60 : vector<1x128xf32>
    %135 = arith.mulf %134, %56 : vector<1x128xf32>
    %cst_44 = arith.constant 0.000000e+00 : f32
    %136 = vector.broadcast %cst_44 : f32 to vector<1x128xf32>
    %137 = arith.select %133, %135, %136 : vector<1x128xi1>, vector<1x128xf32>
    %c0_i32_45 = arith.constant 0 : i32
    %c1_i32_46 = arith.constant 1 : i32
    %138 = vector.broadcast %c0_i32_45 : i32 to vector<1x128xi32>
    %139 = arith.maxsi %138, %58 : vector<1x128xi32>
    %140 = vector.broadcast %c1_i32_46 : i32 to vector<1x128xi32>
    %141 = arith.minsi %140, %139 : vector<1x128xi32>
    %c64_i32_47 = arith.constant 64 : i32
    %142 = vector.broadcast %c64_i32_47 : i32 to vector<1x128xi32>
    %143 = arith.muli %141, %142 : vector<1x128xi32>
    %c0_i32_48 = arith.constant 0 : i32
    %c7_i32_49 = arith.constant 7 : i32
    %144 = vector.broadcast %c0_i32_48 : i32 to vector<1x128xi32>
    %145 = arith.maxsi %144, %62 : vector<1x128xi32>
    %146 = vector.broadcast %c7_i32_49 : i32 to vector<1x128xi32>
    %147 = arith.minsi %146, %145 : vector<1x128xi32>
    %c8_i32_50 = arith.constant 8 : i32
    %148 = vector.broadcast %c8_i32_50 : i32 to vector<1x128xi32>
    %149 = arith.muli %147, %148 : vector<1x128xi32>
    %150 = arith.addi %143, %149 : vector<1x128xi32>
    %c0_i32_51 = arith.constant 0 : i32
    %c7_i32_52 = arith.constant 7 : i32
    %151 = vector.broadcast %c0_i32_51 : i32 to vector<1x128xi32>
    %152 = arith.maxsi %151, %116 : vector<1x128xi32>
    %153 = vector.broadcast %c7_i32_52 : i32 to vector<1x128xi32>
    %154 = arith.minsi %153, %152 : vector<1x128xi32>
    %155 = arith.addi %150, %154 : vector<1x128xi32>
    %156 = vector.broadcast %53 : i32 to vector<1x128xi32>
    %157 = arith.subi %155, %156 : vector<1x128xi32>
    %158 = vector.broadcast %157 : vector<1x128xi32> to vector<128x128xi32>
    %159 = arith.cmpi eq, %52, %158 : vector<128x128xi32>
    %cst_53 = arith.constant 0.000000e+00 : f32
    %160 = vector.shape_cast %137 : vector<1x128xf32> to vector<1x128xf32>
    %161 = vector.broadcast %160 : vector<1x128xf32> to vector<128x128xf32>
    %162 = vector.broadcast %cst_53 : f32 to vector<128x128xf32>
    %163 = arith.select %159, %161, %162 : vector<128x128xi1>, vector<128x128xf32>
    %164 = arith.addf %114, %163 : vector<128x128xf32>
    %c1_i32_54 = arith.constant 1 : i32
    %165 = vector.broadcast %c1_i32_54 : i32 to vector<1x128xi32>
    %166 = arith.addi %50, %165 : vector<1x128xi32>
    %cst_55 = arith.constant 1.000000e+00 : f32
    %167 = vector.broadcast %cst_55 : f32 to vector<1x128xf32>
    %168 = arith.subf %167, %46 : vector<1x128xf32>
    %c0_i32_56 = arith.constant 0 : i32
    %169 = vector.broadcast %c0_i32_56 : i32 to vector<1x128xi32>
    %170 = arith.addi %49, %169 : vector<1x128xi32>
    %c0_i32_57 = arith.constant 0 : i32
    %171 = vector.broadcast %c0_i32_57 : i32 to vector<1x128xi32>
    %172 = arith.cmpi sge, %170, %171 : vector<1x128xi32>
    %c8_i32_58 = arith.constant 8 : i32
    %173 = vector.broadcast %c8_i32_58 : i32 to vector<1x128xi32>
    %174 = arith.cmpi slt, %170, %173 : vector<1x128xi32>
    %175 = arith.andi %172, %174 : vector<1x128xi1>
    %c0_i32_59 = arith.constant 0 : i32
    %176 = vector.broadcast %c0_i32_59 : i32 to vector<1x128xi32>
    %177 = arith.cmpi sge, %166, %176 : vector<1x128xi32>
    %178 = arith.andi %175, %177 : vector<1x128xi1>
    %c8_i32_60 = arith.constant 8 : i32
    %179 = vector.broadcast %c8_i32_60 : i32 to vector<1x128xi32>
    %180 = arith.cmpi slt, %166, %179 : vector<1x128xi32>
    %181 = arith.andi %178, %180 : vector<1x128xi1>
    %c0_i32_61 = arith.constant 0 : i32
    %182 = vector.broadcast %c0_i32_61 : i32 to vector<1x128xi32>
    %183 = arith.cmpi sge, %58, %182 : vector<1x128xi32>
    %184 = arith.andi %181, %183 : vector<1x128xi1>
    %c2_i32_62 = arith.constant 2 : i32
    %185 = vector.broadcast %c2_i32_62 : i32 to vector<1x128xi32>
    %186 = arith.cmpi slt, %58, %185 : vector<1x128xi32>
    %187 = arith.andi %184, %186 : vector<1x128xi1>
    %188 = arith.mulf %168, %47 : vector<1x128xf32>
    %189 = arith.mulf %188, %56 : vector<1x128xf32>
    %cst_63 = arith.constant 0.000000e+00 : f32
    %190 = vector.broadcast %cst_63 : f32 to vector<1x128xf32>
    %191 = arith.select %187, %189, %190 : vector<1x128xi1>, vector<1x128xf32>
    %c0_i32_64 = arith.constant 0 : i32
    %c1_i32_65 = arith.constant 1 : i32
    %192 = vector.broadcast %c0_i32_64 : i32 to vector<1x128xi32>
    %193 = arith.maxsi %192, %58 : vector<1x128xi32>
    %194 = vector.broadcast %c1_i32_65 : i32 to vector<1x128xi32>
    %195 = arith.minsi %194, %193 : vector<1x128xi32>
    %c64_i32_66 = arith.constant 64 : i32
    %196 = vector.broadcast %c64_i32_66 : i32 to vector<1x128xi32>
    %197 = arith.muli %195, %196 : vector<1x128xi32>
    %c0_i32_67 = arith.constant 0 : i32
    %c7_i32_68 = arith.constant 7 : i32
    %198 = vector.broadcast %c0_i32_67 : i32 to vector<1x128xi32>
    %199 = arith.maxsi %198, %166 : vector<1x128xi32>
    %200 = vector.broadcast %c7_i32_68 : i32 to vector<1x128xi32>
    %201 = arith.minsi %200, %199 : vector<1x128xi32>
    %c8_i32_69 = arith.constant 8 : i32
    %202 = vector.broadcast %c8_i32_69 : i32 to vector<1x128xi32>
    %203 = arith.muli %201, %202 : vector<1x128xi32>
    %204 = arith.addi %197, %203 : vector<1x128xi32>
    %c0_i32_70 = arith.constant 0 : i32
    %c7_i32_71 = arith.constant 7 : i32
    %205 = vector.broadcast %c0_i32_70 : i32 to vector<1x128xi32>
    %206 = arith.maxsi %205, %170 : vector<1x128xi32>
    %207 = vector.broadcast %c7_i32_71 : i32 to vector<1x128xi32>
    %208 = arith.minsi %207, %206 : vector<1x128xi32>
    %209 = arith.addi %204, %208 : vector<1x128xi32>
    %210 = vector.broadcast %53 : i32 to vector<1x128xi32>
    %211 = arith.subi %209, %210 : vector<1x128xi32>
    %212 = vector.broadcast %211 : vector<1x128xi32> to vector<128x128xi32>
    %213 = arith.cmpi eq, %52, %212 : vector<128x128xi32>
    %cst_72 = arith.constant 0.000000e+00 : f32
    %214 = vector.shape_cast %191 : vector<1x128xf32> to vector<1x128xf32>
    %215 = vector.broadcast %214 : vector<1x128xf32> to vector<128x128xf32>
    %216 = vector.broadcast %cst_72 : f32 to vector<128x128xf32>
    %217 = arith.select %213, %215, %216 : vector<128x128xi1>, vector<128x128xf32>
    %218 = arith.addf %164, %217 : vector<128x128xf32>
    %c1_i32_73 = arith.constant 1 : i32
    %219 = vector.broadcast %c1_i32_73 : i32 to vector<1x128xi32>
    %220 = arith.addi %49, %219 : vector<1x128xi32>
    %c0_i32_74 = arith.constant 0 : i32
    %221 = vector.broadcast %c0_i32_74 : i32 to vector<1x128xi32>
    %222 = arith.cmpi sge, %220, %221 : vector<1x128xi32>
    %c8_i32_75 = arith.constant 8 : i32
    %223 = vector.broadcast %c8_i32_75 : i32 to vector<1x128xi32>
    %224 = arith.cmpi slt, %220, %223 : vector<1x128xi32>
    %225 = arith.andi %222, %224 : vector<1x128xi1>
    %c0_i32_76 = arith.constant 0 : i32
    %226 = vector.broadcast %c0_i32_76 : i32 to vector<1x128xi32>
    %227 = arith.cmpi sge, %166, %226 : vector<1x128xi32>
    %228 = arith.andi %225, %227 : vector<1x128xi1>
    %c8_i32_77 = arith.constant 8 : i32
    %229 = vector.broadcast %c8_i32_77 : i32 to vector<1x128xi32>
    %230 = arith.cmpi slt, %166, %229 : vector<1x128xi32>
    %231 = arith.andi %228, %230 : vector<1x128xi1>
    %c0_i32_78 = arith.constant 0 : i32
    %232 = vector.broadcast %c0_i32_78 : i32 to vector<1x128xi32>
    %233 = arith.cmpi sge, %58, %232 : vector<1x128xi32>
    %234 = arith.andi %231, %233 : vector<1x128xi1>
    %c2_i32_79 = arith.constant 2 : i32
    %235 = vector.broadcast %c2_i32_79 : i32 to vector<1x128xi32>
    %236 = arith.cmpi slt, %58, %235 : vector<1x128xi32>
    %237 = arith.andi %234, %236 : vector<1x128xi1>
    %238 = arith.mulf %46, %47 : vector<1x128xf32>
    %239 = arith.mulf %238, %56 : vector<1x128xf32>
    %cst_80 = arith.constant 0.000000e+00 : f32
    %240 = vector.broadcast %cst_80 : f32 to vector<1x128xf32>
    %241 = arith.select %237, %239, %240 : vector<1x128xi1>, vector<1x128xf32>
    %c0_i32_81 = arith.constant 0 : i32
    %c1_i32_82 = arith.constant 1 : i32
    %242 = vector.broadcast %c0_i32_81 : i32 to vector<1x128xi32>
    %243 = arith.maxsi %242, %58 : vector<1x128xi32>
    %244 = vector.broadcast %c1_i32_82 : i32 to vector<1x128xi32>
    %245 = arith.minsi %244, %243 : vector<1x128xi32>
    %c64_i32_83 = arith.constant 64 : i32
    %246 = vector.broadcast %c64_i32_83 : i32 to vector<1x128xi32>
    %247 = arith.muli %245, %246 : vector<1x128xi32>
    %c0_i32_84 = arith.constant 0 : i32
    %c7_i32_85 = arith.constant 7 : i32
    %248 = vector.broadcast %c0_i32_84 : i32 to vector<1x128xi32>
    %249 = arith.maxsi %248, %166 : vector<1x128xi32>
    %250 = vector.broadcast %c7_i32_85 : i32 to vector<1x128xi32>
    %251 = arith.minsi %250, %249 : vector<1x128xi32>
    %c8_i32_86 = arith.constant 8 : i32
    %252 = vector.broadcast %c8_i32_86 : i32 to vector<1x128xi32>
    %253 = arith.muli %251, %252 : vector<1x128xi32>
    %254 = arith.addi %247, %253 : vector<1x128xi32>
    %c0_i32_87 = arith.constant 0 : i32
    %c7_i32_88 = arith.constant 7 : i32
    %255 = vector.broadcast %c0_i32_87 : i32 to vector<1x128xi32>
    %256 = arith.maxsi %255, %220 : vector<1x128xi32>
    %257 = vector.broadcast %c7_i32_88 : i32 to vector<1x128xi32>
    %258 = arith.minsi %257, %256 : vector<1x128xi32>
    %259 = arith.addi %254, %258 : vector<1x128xi32>
    %260 = vector.broadcast %53 : i32 to vector<1x128xi32>
    %261 = arith.subi %259, %260 : vector<1x128xi32>
    %262 = vector.broadcast %261 : vector<1x128xi32> to vector<128x128xi32>
    %263 = arith.cmpi eq, %52, %262 : vector<128x128xi32>
    %cst_89 = arith.constant 0.000000e+00 : f32
    %264 = vector.shape_cast %241 : vector<1x128xf32> to vector<1x128xf32>
    %265 = vector.broadcast %264 : vector<1x128xf32> to vector<128x128xf32>
    %266 = vector.broadcast %cst_89 : f32 to vector<128x128xf32>
    %267 = arith.select %263, %265, %266 : vector<128x128xi1>, vector<128x128xf32>
    %268 = arith.addf %218, %267 : vector<128x128xf32>
    %c1_i32_90 = arith.constant 1 : i32
    %269 = vector.broadcast %c1_i32_90 : i32 to vector<1x128xi32>
    %270 = arith.addi %51, %269 : vector<1x128xi32>
    %cst_91 = arith.constant 1.000000e+00 : f32
    %271 = vector.broadcast %cst_91 : f32 to vector<1x128xf32>
    %272 = arith.subf %271, %47 : vector<1x128xf32>
    %c0_i32_92 = arith.constant 0 : i32
    %273 = vector.broadcast %c0_i32_92 : i32 to vector<1x128xi32>
    %274 = arith.addi %50, %273 : vector<1x128xi32>
    %cst_93 = arith.constant 1.000000e+00 : f32
    %275 = vector.broadcast %cst_93 : f32 to vector<1x128xf32>
    %276 = arith.subf %275, %46 : vector<1x128xf32>
    %c0_i32_94 = arith.constant 0 : i32
    %277 = vector.broadcast %c0_i32_94 : i32 to vector<1x128xi32>
    %278 = arith.addi %49, %277 : vector<1x128xi32>
    %c0_i32_95 = arith.constant 0 : i32
    %279 = vector.broadcast %c0_i32_95 : i32 to vector<1x128xi32>
    %280 = arith.cmpi sge, %278, %279 : vector<1x128xi32>
    %c8_i32_96 = arith.constant 8 : i32
    %281 = vector.broadcast %c8_i32_96 : i32 to vector<1x128xi32>
    %282 = arith.cmpi slt, %278, %281 : vector<1x128xi32>
    %283 = arith.andi %280, %282 : vector<1x128xi1>
    %c0_i32_97 = arith.constant 0 : i32
    %284 = vector.broadcast %c0_i32_97 : i32 to vector<1x128xi32>
    %285 = arith.cmpi sge, %274, %284 : vector<1x128xi32>
    %286 = arith.andi %283, %285 : vector<1x128xi1>
    %c8_i32_98 = arith.constant 8 : i32
    %287 = vector.broadcast %c8_i32_98 : i32 to vector<1x128xi32>
    %288 = arith.cmpi slt, %274, %287 : vector<1x128xi32>
    %289 = arith.andi %286, %288 : vector<1x128xi1>
    %c0_i32_99 = arith.constant 0 : i32
    %290 = vector.broadcast %c0_i32_99 : i32 to vector<1x128xi32>
    %291 = arith.cmpi sge, %270, %290 : vector<1x128xi32>
    %292 = arith.andi %289, %291 : vector<1x128xi1>
    %c2_i32_100 = arith.constant 2 : i32
    %293 = vector.broadcast %c2_i32_100 : i32 to vector<1x128xi32>
    %294 = arith.cmpi slt, %270, %293 : vector<1x128xi32>
    %295 = arith.andi %292, %294 : vector<1x128xi1>
    %296 = arith.mulf %276, %272 : vector<1x128xf32>
    %297 = arith.mulf %296, %48 : vector<1x128xf32>
    %cst_101 = arith.constant 0.000000e+00 : f32
    %298 = vector.broadcast %cst_101 : f32 to vector<1x128xf32>
    %299 = arith.select %295, %297, %298 : vector<1x128xi1>, vector<1x128xf32>
    %c0_i32_102 = arith.constant 0 : i32
    %c1_i32_103 = arith.constant 1 : i32
    %300 = vector.broadcast %c0_i32_102 : i32 to vector<1x128xi32>
    %301 = arith.maxsi %300, %270 : vector<1x128xi32>
    %302 = vector.broadcast %c1_i32_103 : i32 to vector<1x128xi32>
    %303 = arith.minsi %302, %301 : vector<1x128xi32>
    %c64_i32_104 = arith.constant 64 : i32
    %304 = vector.broadcast %c64_i32_104 : i32 to vector<1x128xi32>
    %305 = arith.muli %303, %304 : vector<1x128xi32>
    %c0_i32_105 = arith.constant 0 : i32
    %c7_i32_106 = arith.constant 7 : i32
    %306 = vector.broadcast %c0_i32_105 : i32 to vector<1x128xi32>
    %307 = arith.maxsi %306, %274 : vector<1x128xi32>
    %308 = vector.broadcast %c7_i32_106 : i32 to vector<1x128xi32>
    %309 = arith.minsi %308, %307 : vector<1x128xi32>
    %c8_i32_107 = arith.constant 8 : i32
    %310 = vector.broadcast %c8_i32_107 : i32 to vector<1x128xi32>
    %311 = arith.muli %309, %310 : vector<1x128xi32>
    %312 = arith.addi %305, %311 : vector<1x128xi32>
    %c0_i32_108 = arith.constant 0 : i32
    %c7_i32_109 = arith.constant 7 : i32
    %313 = vector.broadcast %c0_i32_108 : i32 to vector<1x128xi32>
    %314 = arith.maxsi %313, %278 : vector<1x128xi32>
    %315 = vector.broadcast %c7_i32_109 : i32 to vector<1x128xi32>
    %316 = arith.minsi %315, %314 : vector<1x128xi32>
    %317 = arith.addi %312, %316 : vector<1x128xi32>
    %318 = vector.broadcast %53 : i32 to vector<1x128xi32>
    %319 = arith.subi %317, %318 : vector<1x128xi32>
    %320 = vector.broadcast %319 : vector<1x128xi32> to vector<128x128xi32>
    %321 = arith.cmpi eq, %52, %320 : vector<128x128xi32>
    %cst_110 = arith.constant 0.000000e+00 : f32
    %322 = vector.shape_cast %299 : vector<1x128xf32> to vector<1x128xf32>
    %323 = vector.broadcast %322 : vector<1x128xf32> to vector<128x128xf32>
    %324 = vector.broadcast %cst_110 : f32 to vector<128x128xf32>
    %325 = arith.select %321, %323, %324 : vector<128x128xi1>, vector<128x128xf32>
    %326 = arith.addf %268, %325 : vector<128x128xf32>
    %c1_i32_111 = arith.constant 1 : i32
    %327 = vector.broadcast %c1_i32_111 : i32 to vector<1x128xi32>
    %328 = arith.addi %49, %327 : vector<1x128xi32>
    %c0_i32_112 = arith.constant 0 : i32
    %329 = vector.broadcast %c0_i32_112 : i32 to vector<1x128xi32>
    %330 = arith.cmpi sge, %328, %329 : vector<1x128xi32>
    %c8_i32_113 = arith.constant 8 : i32
    %331 = vector.broadcast %c8_i32_113 : i32 to vector<1x128xi32>
    %332 = arith.cmpi slt, %328, %331 : vector<1x128xi32>
    %333 = arith.andi %330, %332 : vector<1x128xi1>
    %c0_i32_114 = arith.constant 0 : i32
    %334 = vector.broadcast %c0_i32_114 : i32 to vector<1x128xi32>
    %335 = arith.cmpi sge, %274, %334 : vector<1x128xi32>
    %336 = arith.andi %333, %335 : vector<1x128xi1>
    %c8_i32_115 = arith.constant 8 : i32
    %337 = vector.broadcast %c8_i32_115 : i32 to vector<1x128xi32>
    %338 = arith.cmpi slt, %274, %337 : vector<1x128xi32>
    %339 = arith.andi %336, %338 : vector<1x128xi1>
    %c0_i32_116 = arith.constant 0 : i32
    %340 = vector.broadcast %c0_i32_116 : i32 to vector<1x128xi32>
    %341 = arith.cmpi sge, %270, %340 : vector<1x128xi32>
    %342 = arith.andi %339, %341 : vector<1x128xi1>
    %c2_i32_117 = arith.constant 2 : i32
    %343 = vector.broadcast %c2_i32_117 : i32 to vector<1x128xi32>
    %344 = arith.cmpi slt, %270, %343 : vector<1x128xi32>
    %345 = arith.andi %342, %344 : vector<1x128xi1>
    %346 = arith.mulf %46, %272 : vector<1x128xf32>
    %347 = arith.mulf %346, %48 : vector<1x128xf32>
    %cst_118 = arith.constant 0.000000e+00 : f32
    %348 = vector.broadcast %cst_118 : f32 to vector<1x128xf32>
    %349 = arith.select %345, %347, %348 : vector<1x128xi1>, vector<1x128xf32>
    %c0_i32_119 = arith.constant 0 : i32
    %c1_i32_120 = arith.constant 1 : i32
    %350 = vector.broadcast %c0_i32_119 : i32 to vector<1x128xi32>
    %351 = arith.maxsi %350, %270 : vector<1x128xi32>
    %352 = vector.broadcast %c1_i32_120 : i32 to vector<1x128xi32>
    %353 = arith.minsi %352, %351 : vector<1x128xi32>
    %c64_i32_121 = arith.constant 64 : i32
    %354 = vector.broadcast %c64_i32_121 : i32 to vector<1x128xi32>
    %355 = arith.muli %353, %354 : vector<1x128xi32>
    %c0_i32_122 = arith.constant 0 : i32
    %c7_i32_123 = arith.constant 7 : i32
    %356 = vector.broadcast %c0_i32_122 : i32 to vector<1x128xi32>
    %357 = arith.maxsi %356, %274 : vector<1x128xi32>
    %358 = vector.broadcast %c7_i32_123 : i32 to vector<1x128xi32>
    %359 = arith.minsi %358, %357 : vector<1x128xi32>
    %c8_i32_124 = arith.constant 8 : i32
    %360 = vector.broadcast %c8_i32_124 : i32 to vector<1x128xi32>
    %361 = arith.muli %359, %360 : vector<1x128xi32>
    %362 = arith.addi %355, %361 : vector<1x128xi32>
    %c0_i32_125 = arith.constant 0 : i32
    %c7_i32_126 = arith.constant 7 : i32
    %363 = vector.broadcast %c0_i32_125 : i32 to vector<1x128xi32>
    %364 = arith.maxsi %363, %328 : vector<1x128xi32>
    %365 = vector.broadcast %c7_i32_126 : i32 to vector<1x128xi32>
    %366 = arith.minsi %365, %364 : vector<1x128xi32>
    %367 = arith.addi %362, %366 : vector<1x128xi32>
    %368 = vector.broadcast %53 : i32 to vector<1x128xi32>
    %369 = arith.subi %367, %368 : vector<1x128xi32>
    %370 = vector.broadcast %369 : vector<1x128xi32> to vector<128x128xi32>
    %371 = arith.cmpi eq, %52, %370 : vector<128x128xi32>
    %cst_127 = arith.constant 0.000000e+00 : f32
    %372 = vector.shape_cast %349 : vector<1x128xf32> to vector<1x128xf32>
    %373 = vector.broadcast %372 : vector<1x128xf32> to vector<128x128xf32>
    %374 = vector.broadcast %cst_127 : f32 to vector<128x128xf32>
    %375 = arith.select %371, %373, %374 : vector<128x128xi1>, vector<128x128xf32>
    %376 = arith.addf %326, %375 : vector<128x128xf32>
    %c1_i32_128 = arith.constant 1 : i32
    %377 = vector.broadcast %c1_i32_128 : i32 to vector<1x128xi32>
    %378 = arith.addi %50, %377 : vector<1x128xi32>
    %cst_129 = arith.constant 1.000000e+00 : f32
    %379 = vector.broadcast %cst_129 : f32 to vector<1x128xf32>
    %380 = arith.subf %379, %46 : vector<1x128xf32>
    %c0_i32_130 = arith.constant 0 : i32
    %381 = vector.broadcast %c0_i32_130 : i32 to vector<1x128xi32>
    %382 = arith.addi %49, %381 : vector<1x128xi32>
    %c0_i32_131 = arith.constant 0 : i32
    %383 = vector.broadcast %c0_i32_131 : i32 to vector<1x128xi32>
    %384 = arith.cmpi sge, %382, %383 : vector<1x128xi32>
    %c8_i32_132 = arith.constant 8 : i32
    %385 = vector.broadcast %c8_i32_132 : i32 to vector<1x128xi32>
    %386 = arith.cmpi slt, %382, %385 : vector<1x128xi32>
    %387 = arith.andi %384, %386 : vector<1x128xi1>
    %c0_i32_133 = arith.constant 0 : i32
    %388 = vector.broadcast %c0_i32_133 : i32 to vector<1x128xi32>
    %389 = arith.cmpi sge, %378, %388 : vector<1x128xi32>
    %390 = arith.andi %387, %389 : vector<1x128xi1>
    %c8_i32_134 = arith.constant 8 : i32
    %391 = vector.broadcast %c8_i32_134 : i32 to vector<1x128xi32>
    %392 = arith.cmpi slt, %378, %391 : vector<1x128xi32>
    %393 = arith.andi %390, %392 : vector<1x128xi1>
    %c0_i32_135 = arith.constant 0 : i32
    %394 = vector.broadcast %c0_i32_135 : i32 to vector<1x128xi32>
    %395 = arith.cmpi sge, %270, %394 : vector<1x128xi32>
    %396 = arith.andi %393, %395 : vector<1x128xi1>
    %c2_i32_136 = arith.constant 2 : i32
    %397 = vector.broadcast %c2_i32_136 : i32 to vector<1x128xi32>
    %398 = arith.cmpi slt, %270, %397 : vector<1x128xi32>
    %399 = arith.andi %396, %398 : vector<1x128xi1>
    %400 = arith.mulf %380, %47 : vector<1x128xf32>
    %401 = arith.mulf %400, %48 : vector<1x128xf32>
    %cst_137 = arith.constant 0.000000e+00 : f32
    %402 = vector.broadcast %cst_137 : f32 to vector<1x128xf32>
    %403 = arith.select %399, %401, %402 : vector<1x128xi1>, vector<1x128xf32>
    %c0_i32_138 = arith.constant 0 : i32
    %c1_i32_139 = arith.constant 1 : i32
    %404 = vector.broadcast %c0_i32_138 : i32 to vector<1x128xi32>
    %405 = arith.maxsi %404, %270 : vector<1x128xi32>
    %406 = vector.broadcast %c1_i32_139 : i32 to vector<1x128xi32>
    %407 = arith.minsi %406, %405 : vector<1x128xi32>
    %c64_i32_140 = arith.constant 64 : i32
    %408 = vector.broadcast %c64_i32_140 : i32 to vector<1x128xi32>
    %409 = arith.muli %407, %408 : vector<1x128xi32>
    %c0_i32_141 = arith.constant 0 : i32
    %c7_i32_142 = arith.constant 7 : i32
    %410 = vector.broadcast %c0_i32_141 : i32 to vector<1x128xi32>
    %411 = arith.maxsi %410, %378 : vector<1x128xi32>
    %412 = vector.broadcast %c7_i32_142 : i32 to vector<1x128xi32>
    %413 = arith.minsi %412, %411 : vector<1x128xi32>
    %c8_i32_143 = arith.constant 8 : i32
    %414 = vector.broadcast %c8_i32_143 : i32 to vector<1x128xi32>
    %415 = arith.muli %413, %414 : vector<1x128xi32>
    %416 = arith.addi %409, %415 : vector<1x128xi32>
    %c0_i32_144 = arith.constant 0 : i32
    %c7_i32_145 = arith.constant 7 : i32
    %417 = vector.broadcast %c0_i32_144 : i32 to vector<1x128xi32>
    %418 = arith.maxsi %417, %382 : vector<1x128xi32>
    %419 = vector.broadcast %c7_i32_145 : i32 to vector<1x128xi32>
    %420 = arith.minsi %419, %418 : vector<1x128xi32>
    %421 = arith.addi %416, %420 : vector<1x128xi32>
    %422 = vector.broadcast %53 : i32 to vector<1x128xi32>
    %423 = arith.subi %421, %422 : vector<1x128xi32>
    %424 = vector.broadcast %423 : vector<1x128xi32> to vector<128x128xi32>
    %425 = arith.cmpi eq, %52, %424 : vector<128x128xi32>
    %cst_146 = arith.constant 0.000000e+00 : f32
    %426 = vector.shape_cast %403 : vector<1x128xf32> to vector<1x128xf32>
    %427 = vector.broadcast %426 : vector<1x128xf32> to vector<128x128xf32>
    %428 = vector.broadcast %cst_146 : f32 to vector<128x128xf32>
    %429 = arith.select %425, %427, %428 : vector<128x128xi1>, vector<128x128xf32>
    %430 = arith.addf %376, %429 : vector<128x128xf32>
    %c1_i32_147 = arith.constant 1 : i32
    %431 = vector.broadcast %c1_i32_147 : i32 to vector<1x128xi32>
    %432 = arith.addi %49, %431 : vector<1x128xi32>
    %c0_i32_148 = arith.constant 0 : i32
    %433 = vector.broadcast %c0_i32_148 : i32 to vector<1x128xi32>
    %434 = arith.cmpi sge, %432, %433 : vector<1x128xi32>
    %c8_i32_149 = arith.constant 8 : i32
    %435 = vector.broadcast %c8_i32_149 : i32 to vector<1x128xi32>
    %436 = arith.cmpi slt, %432, %435 : vector<1x128xi32>
    %437 = arith.andi %434, %436 : vector<1x128xi1>
    %c0_i32_150 = arith.constant 0 : i32
    %438 = vector.broadcast %c0_i32_150 : i32 to vector<1x128xi32>
    %439 = arith.cmpi sge, %378, %438 : vector<1x128xi32>
    %440 = arith.andi %437, %439 : vector<1x128xi1>
    %c8_i32_151 = arith.constant 8 : i32
    %441 = vector.broadcast %c8_i32_151 : i32 to vector<1x128xi32>
    %442 = arith.cmpi slt, %378, %441 : vector<1x128xi32>
    %443 = arith.andi %440, %442 : vector<1x128xi1>
    %c0_i32_152 = arith.constant 0 : i32
    %444 = vector.broadcast %c0_i32_152 : i32 to vector<1x128xi32>
    %445 = arith.cmpi sge, %270, %444 : vector<1x128xi32>
    %446 = arith.andi %443, %445 : vector<1x128xi1>
    %c2_i32_153 = arith.constant 2 : i32
    %447 = vector.broadcast %c2_i32_153 : i32 to vector<1x128xi32>
    %448 = arith.cmpi slt, %270, %447 : vector<1x128xi32>
    %449 = arith.andi %446, %448 : vector<1x128xi1>
    %450 = arith.mulf %46, %47 : vector<1x128xf32>
    %451 = arith.mulf %450, %48 : vector<1x128xf32>
    %cst_154 = arith.constant 0.000000e+00 : f32
    %452 = vector.broadcast %cst_154 : f32 to vector<1x128xf32>
    %453 = arith.select %449, %451, %452 : vector<1x128xi1>, vector<1x128xf32>
    %c0_i32_155 = arith.constant 0 : i32
    %c1_i32_156 = arith.constant 1 : i32
    %454 = vector.broadcast %c0_i32_155 : i32 to vector<1x128xi32>
    %455 = arith.maxsi %454, %270 : vector<1x128xi32>
    %456 = vector.broadcast %c1_i32_156 : i32 to vector<1x128xi32>
    %457 = arith.minsi %456, %455 : vector<1x128xi32>
    %c64_i32_157 = arith.constant 64 : i32
    %458 = vector.broadcast %c64_i32_157 : i32 to vector<1x128xi32>
    %459 = arith.muli %457, %458 : vector<1x128xi32>
    %c0_i32_158 = arith.constant 0 : i32
    %c7_i32_159 = arith.constant 7 : i32
    %460 = vector.broadcast %c0_i32_158 : i32 to vector<1x128xi32>
    %461 = arith.maxsi %460, %378 : vector<1x128xi32>
    %462 = vector.broadcast %c7_i32_159 : i32 to vector<1x128xi32>
    %463 = arith.minsi %462, %461 : vector<1x128xi32>
    %c8_i32_160 = arith.constant 8 : i32
    %464 = vector.broadcast %c8_i32_160 : i32 to vector<1x128xi32>
    %465 = arith.muli %463, %464 : vector<1x128xi32>
    %466 = arith.addi %459, %465 : vector<1x128xi32>
    %c0_i32_161 = arith.constant 0 : i32
    %c7_i32_162 = arith.constant 7 : i32
    %467 = vector.broadcast %c0_i32_161 : i32 to vector<1x128xi32>
    %468 = arith.maxsi %467, %432 : vector<1x128xi32>
    %469 = vector.broadcast %c7_i32_162 : i32 to vector<1x128xi32>
    %470 = arith.minsi %469, %468 : vector<1x128xi32>
    %471 = arith.addi %466, %470 : vector<1x128xi32>
    %472 = vector.broadcast %53 : i32 to vector<1x128xi32>
    %473 = arith.subi %471, %472 : vector<1x128xi32>
    %474 = vector.broadcast %473 : vector<1x128xi32> to vector<128x128xi32>
    %475 = arith.cmpi eq, %52, %474 : vector<128x128xi32>
    %cst_163 = arith.constant 0.000000e+00 : f32
    %476 = vector.shape_cast %453 : vector<1x128xf32> to vector<1x128xf32>
    %477 = vector.broadcast %476 : vector<1x128xf32> to vector<128x128xf32>
    %478 = vector.broadcast %cst_163 : f32 to vector<128x128xf32>
    %479 = arith.select %475, %477, %478 : vector<128x128xi1>, vector<128x128xf32>
    %480 = arith.addf %430, %479 : vector<128x128xf32>
    %c0_164 = arith.constant 0 : index
    %c0_165 = arith.constant 0 : index
    %481 = vector.load %arg5[%c0_164, %c0_165] : memref<16x128xf32, #tpu.memory_space<vmem>>, vector<16x128xf32>
    %c0_166 = arith.constant 0 : index
    %c0_167 = arith.constant 0 : index
    %482 = vector.load %arg3[%c0_166, %c0_167] : memref<16x128xf32, #tpu.memory_space<vmem>>, vector<16x128xf32>
    %cst_168 = arith.constant dense<0.000000e+00> : vector<16x128xf32>
    %483 = tpu.matmul %482, %480, %cst_168 {dimension_numbers = #tpu.dot_dimension_numbers<[1], [0], [0], [1], [0, 0, 1, 1], [], []>} : vector<16x128xf32>, vector<128x128xf32>, vector<16x128xf32> -> vector<16x128xf32>
    %484 = arith.addf %481, %483 : vector<16x128xf32>
    %c0_169 = arith.constant 0 : index
    %c0_170 = arith.constant 0 : index
    %485 = vector.load %arg5[%c0_169, %c0_170] : memref<16x128xf32, #tpu.memory_space<vmem>>, vector<16x128xf32>
    tpu.vector_store %arg5[%c0_169, %c0_170], %484 {strides = array<i32>} : memref<16x128xf32, #tpu.memory_space<vmem>>, vector<16x128xf32>,
    %c0_i32_171 = arith.constant 0 : i32
    %486 = arith.cmpi eq, %arg1, %c0_i32_171 : i32
    %487 = arith.extui %486 : i1 to i32
    %c0_i32_172 = arith.constant 0 : i32
    %488 = arith.cmpi ne, %487, %c0_i32_172 : i32
    scf.if %488 {
      %c0_173 = arith.constant 0 : index
      %c0_174 = arith.constant 0 : index
      %489 = vector.load %arg5[%c0_173, %c0_174] : memref<16x128xf32, #tpu.memory_space<vmem>>, vector<16x128xf32>
      %490 = tpu.iota {dimensions = array<i32: 0>} : vector<16x128xi32>
      %c0_i32_175 = arith.constant 0 : i32
      %491 = vector.broadcast %c0_i32_175 : i32 to vector<16x128xi32>
      %492 = arith.cmpi eq, %490, %491 : vector<16x128xi32>
      %493 = vector.extract_strided_slice %3 {offsets = [3, 0], sizes = [1, 128], strides = [1, 1]} : vector<8x128xf32> to vector<1x128xf32>
      %494 = vector.shape_cast %493 : vector<1x128xf32> to vector<1x128xf32>
      %495 = vector.broadcast %494 : vector<1x128xf32> to vector<16x128xf32>
      %496 = arith.select %492, %495, %489 : vector<16x128xi1>, vector<16x128xf32>
      %c9_i32 = arith.constant 9 : i32
      %497 = vector.broadcast %c9_i32 : i32 to vector<16x128xi32>
      %498 = arith.cmpi eq, %490, %497 : vector<16x128xi32>
      %499 = vector.extract_strided_slice %3 {offsets = [4, 0], sizes = [1, 128], strides = [1, 1]} : vector<8x128xf32> to vector<1x128xf32>
      %500 = vector.shape_cast %499 : vector<1x128xf32> to vector<1x128xf32>
      %501 = vector.broadcast %500 : vector<1x128xf32> to vector<16x128xf32>
      %502 = arith.select %498, %501, %496 : vector<16x128xi1>, vector<16x128xf32>
      %c10_i32 = arith.constant 10 : i32
      %503 = vector.broadcast %c10_i32 : i32 to vector<16x128xi32>
      %504 = arith.cmpi eq, %490, %503 : vector<16x128xi32>
      %505 = vector.extract_strided_slice %3 {offsets = [5, 0], sizes = [1, 128], strides = [1, 1]} : vector<8x128xf32> to vector<1x128xf32>
      %506 = vector.shape_cast %505 : vector<1x128xf32> to vector<1x128xf32>
      %507 = vector.broadcast %506 : vector<1x128xf32> to vector<16x128xf32>
      %508 = arith.select %504, %507, %502 : vector<16x128xi1>, vector<16x128xf32>
      %c0_176 = arith.constant 0 : index
      %c0_177 = arith.constant 0 : index
      %509 = vector.load %arg4[%c0_176, %c0_177] : memref<16x128xf32, #tpu.memory_space<vmem>>, vector<16x128xf32>
      tpu.vector_store %arg4[%c0_176, %c0_177], %508 {strides = array<i32>} : memref<16x128xf32, #tpu.memory_space<vmem>>, vector<16x128xf32>,
    } else {
    }
    return
  }
  func.func @transform_0(%arg0: i32, %arg1: i32) -> (i32, i32) {
    %c0_i32 = arith.constant 0 : i32
    %c0_i32_0 = arith.constant 0 : i32
    return %c0_i32, %arg0 : i32, i32
  }
  func.func @transform_1(%arg0: i32, %arg1: i32) -> (i32, i32) {
    %c0_i32 = arith.constant 0 : i32
    %c0_i32_0 = arith.constant 0 : i32
    return %c0_i32, %arg1 : i32, i32
  }
  func.func @transform_2(%arg0: i32, %arg1: i32) -> (i32, i32) {
    %c0_i32 = arith.constant 0 : i32
    %c0_i32_0 = arith.constant 0 : i32
    return %c0_i32, %arg0 : i32, i32
  }
}

</mosaic_0001>

<llo_original>
// kernel: tpu_custom_call.1
$region0: #{tpu_custom_call.1}
  #allocation0 [shape = 'u32[]', space=smem, size = 0x4, offset = 0x4, fixed_abs, tag = 'smem constant byte address 0x4 - core index']
  #allocation1 [shape = 'u32[144,128]{1,0:T(1,128)}', space=vmem, size = 0x12000, scoped, tag = 'internal scratch']
  #allocation2 [shape = 'f32[16,128]{1,0:T(8,128)}', space=vmem, size = 0x2000, scoped, tag = 'scratch operand']
  %s0 = inlined_call_operand.hbm [shape: f32[8,128], index: 0, kind: input, shape index: {}]
  %s1 = inlined_call_operand.hbm [shape: f32[16,128], index: 1, kind: input, shape index: {}]
  %s2 = inlined_call_operand.hbm [shape: f32[16,128], index: 2, kind: output, shape index: {}]
  %s3 = sld [smem:[#allocation0]]
  $region34: #{tpu_custom_call.1} parent=0
    _
  %s5 = ssub.s32 1, %s3
  %s6 = scalar_select 0, %s5, %s3
  $region1: #{tpu_custom_call.1} parent=0
    #allocation3 [shape = 'u8[4096]{0}', space=vmem, size = 0x1000, scoped, tag = 'input window, operand 0, single buffered']
    #allocation4 [shape = 's32[1]{0}', space=sflag, size = 0x4, scoped, tag = 'scoped memory for tpu_custom_call.1']
    #allocation5 [shape = 's32[1]{0}', space=sflag, size = 0x4, scoped, tag = 'scoped memory for tpu_custom_call.1']
    #allocation6 [shape = 'u8[8192]{0}', space=vmem, size = 0x2000, scoped, tag = 'input window, operand 1, single buffered']
    #allocation7 [shape = 's32[1]{0}', space=sflag, size = 0x4, scoped, tag = 'scoped memory for tpu_custom_call.1']
    #allocation8 [shape = 'u8[8192]{0}', space=vmem, size = 0x2000, scoped, tag = 'output window, operand 0, single buffered']
    %7 = vsyncpa [#allocation4], 0
    %8 = vsyncpa [#allocation7], 0
    %9 = vsyncpa [#allocation5], 0
    // Predicated region
    $region2: #{tpu_custom_call.1} parent=1 // pred_check
      _
    $region3: #{tpu_custom_call.1} parent=1 // pred_check_branch
      %11 = sbr.rel (0) target = $region5
    $region4: #{tpu_custom_call.1} parent=1 // pred_region
      %s13 = ssub.s32 128, 128
      %14 = vsyncadd [#allocation4], %s13
      %s16 = sshll.u32 [#allocation3], 4
      %s17 = int_to_ptr.vmem [resolvable:$true] %s16
      %19 = dma.hbm_to_vmem [thread:$0]  %s0, 128, %s17, [#allocation4]
    $region5: #{tpu_custom_call.1} parent=1 // pred_fallthru
      _
    // Predicated region
    $region6: #{tpu_custom_call.1} parent=1 // pred_check
      _
    $region7: #{tpu_custom_call.1} parent=1 // pred_check_branch
      %21 = sbr.rel (0) target = $region9
    $region8: #{tpu_custom_call.1} parent=1 // pred_region
      %s23 = ssub.s32 256, 256
      %24 = vsyncadd [#allocation7], %s23
      %s25 = sshll.u32 [#allocation6], 4
      %s26 = int_to_ptr.vmem [resolvable:$true] %s25
      %31 = dma.hbm_to_vmem [thread:$0]  %s1, 256, %s26, [#allocation7], 128, 128, 8
    $region9: #{tpu_custom_call.1} parent=1 // pred_fallthru
      _
    // Predicated region
    $region10: #{tpu_custom_call.1} parent=1 // pred_check
      _
    $region11: #{tpu_custom_call.1} parent=1 // pred_check_branch
      %33 = sbr.rel (0) target = $region13
    $region12: #{tpu_custom_call.1} parent=1 // pred_region
      %34 = dma.done [#allocation4], 128
    $region13: #{tpu_custom_call.1} parent=1 // pred_fallthru
      _
    // Predicated region
    $region14: #{tpu_custom_call.1} parent=1 // pred_check
      _
    $region15: #{tpu_custom_call.1} parent=1 // pred_check_branch
      %36 = sbr.rel (0) target = $region17
    $region16: #{tpu_custom_call.1} parent=1 // pred_region
      %37 = dma.done [#allocation7], 256
    $region17: #{tpu_custom_call.1} parent=1 // pred_fallthru
      _
    %p38 = scmp.eq.s32.totalorder 0, 0
    // Predicated region
    $region18: #{tpu_custom_call.1} parent=1 // pred_check
      %p39 = pneg %p38
    $region19: #{tpu_custom_call.1} parent=1 // pred_check_branch
      %41 = sbr.rel (%p39) target = $region21
    $region20: #{tpu_custom_call.1} parent=1 // pred_region
      %42 = vst [vmem:[#allocation2] sm:$0xff] 0.0
      %43 = vst [vmem:[#allocation2 + $0x8] sm:$0xff] 0.0
    $region21: #{tpu_custom_call.1} parent=1 // pred_fallthru
      _
    %v44 = vld [vmem:[#allocation3] sm:$0xff]
    %v45 = vmul.f32 %v44, 2.0
    %v46 = vrcp.pop 15.0
    %v47 = vmul.f32 %v45, %v46
    %v48 = vsub.f32 %v47, 1.0
    %v49 = vsub.f32 %v45, 1.0
    %v50 = vadd.f32 %v48, 1.0
    %v51 = vmul.f32 %v50, 0.5
    %v52 = vmul.f32 %v51, 7.0
    %v53 = vadd.f32 %v49, 1.0
    %v54 = vmul.f32 %v53, 0.5
    %v55 = vfloor.f32 %v52
    %v56 = vfloor.f32 %v54
    %v57 = vsub.f32 %v52, %v55
    %v58 = vsub.f32 %v54, %v56
    %v59 = vcvt.f32.s32.to.zero.pseudo %v55
    %v60 = vcvt.f32.s32.to.zero.pseudo %v56
    %v61 = vlaneseq
    %v62 = vshrl.u32 %v61, 7
    %v63 = vadd.s32 %v62, 8
    %v64 = vadd.s32 %v62, 16
    %v65 = vadd.s32 %v62, 24
    %v66 = vadd.s32 %v62, 32
    %v67 = vadd.s32 %v62, 40
    %v68 = vadd.s32 %v62, 48
    %v69 = vadd.s32 %v62, 56
    %v70 = vadd.s32 %v62, 64
    %v71 = vadd.s32 %v62, 72
    %v72 = vadd.s32 %v62, 80
    %v73 = vadd.s32 %v62, 88
    %v74 = vadd.s32 %v62, 96
    %v75 = vadd.s32 %v62, 104
    %v76 = vadd.s32 %v62, 112
    %v77 = vadd.s32 %v62, 120
    %s78 = smul.u32 0, 128
    %v79 = vsub.f32 1.0, %v58
    %v80 = vsub.f32 1.0, %v57
    %vm81 = vcmp.ge.s32.totalorder %v59, 0
    %vm82 = vcmp.lt.s32.totalorder %v59, 8
    %vm83 = vmand %vm81, %vm82
    %v84 = vsel %vm81, 1, 0
    %v85 = vrot.slane %v84, 1
    %vm86 = vcmp.ne.s32.totalorder %v85, 0
    %vm87 = vmand %vm83, %vm86
    %v88 = vsel %vm82, 1, 0
    %v89 = vrot.slane %v88, 1
    %vm90 = vcmp.ne.s32.totalorder %v89, 0
    %vm91 = vmand %vm87, %vm90
    %vm92 = vcmp.ge.s32.totalorder %v60, 0
    %v93 = vsel %vm92, 1, 0
    %v94 = vrot.slane %v93, 2
    %vm95 = vcmp.ne.s32.totalorder %v94, 0
    %vm96 = vmand %vm91, %vm95
    %vm97 = vcmp.lt.s32.totalorder %v60, 2
    %v98 = vsel %vm97, 1, 0
    %v99 = vrot.slane %v98, 2
    %vm100 = vcmp.ne.s32.totalorder %v99, 0
    %vm101 = vmand %vm96, %vm100
    %v103 = vrot.slane %v80, 1
    %v105 = vmul.f32 %v80, %v103
    %v107 = vrot.slane %v79, 2
    %v109 = vmul.f32 %v105, %v107
    %v110 = vsel %vm101, %v109, 0.0
    %vm111 = vcmp.gt.s32.totalorder %v60, 0
    %v112 = vsel %vm111, %v60, 0
    %vm113 = vcmp.lt.s32.totalorder %v112, 1
    %v114 = vsel %vm113, %v112, 1
    %v115 = vmul.u32 %v114, 64
    %vm116 = vcmp.gt.s32.totalorder %v59, 0
    %v117 = vsel %vm116, %v59, 0
    %vm118 = vcmp.lt.s32.totalorder %v117, 7
    %v119 = vsel %vm118, %v117, 7
    %v120 = vmul.u32 %v119, 8
    %v121 = vrot.slane %v120, 7
    %v122 = vadd.s32 %v115, %v121
    %v123 = vrot.slane %v119, 6
    %v124 = vadd.s32 %v122, %v123
    %v125 = vstv %s78
    %v126 = vsub.s32 %v124, %v125
    %v127 = vlaneseq
    %v128 = vshrl.u32 %v127, 7
    %v129 = vsub.s32 2, %v128
    %v130 = vrot.slane %v126, %v129
    %vm131 = vcmp.eq.s32.totalorder %v62, %v130
    %vm132 = vcmp.eq.s32.totalorder %v63, %v130
    %vm133 = vcmp.eq.s32.totalorder %v64, %v130
    %vm134 = vcmp.eq.s32.totalorder %v65, %v130
    %vm135 = vcmp.eq.s32.totalorder %v66, %v130
    %vm136 = vcmp.eq.s32.totalorder %v67, %v130
    %vm137 = vcmp.eq.s32.totalorder %v68, %v130
    %vm138 = vcmp.eq.s32.totalorder %v69, %v130
    %vm139 = vcmp.eq.s32.totalorder %v70, %v130
    %vm140 = vcmp.eq.s32.totalorder %v71, %v130
    %vm141 = vcmp.eq.s32.totalorder %v72, %v130
    %vm142 = vcmp.eq.s32.totalorder %v73, %v130
    %vm143 = vcmp.eq.s32.totalorder %v74, %v130
    %vm144 = vcmp.eq.s32.totalorder %v75, %v130
    %vm145 = vcmp.eq.s32.totalorder %v76, %v130
    %vm146 = vcmp.eq.s32.totalorder %v77, %v130
    %v147 = vlaneseq
    %v148 = vshrl.u32 %v147, 7
    %v149 = vsub.s32 0, %v148
    %v150 = vrot.slane %v110, %v149
    %v151 = vsel %vm131, %v150, 0.0
    %v152 = vsel %vm132, %v150, 0.0
    %v153 = vsel %vm133, %v150, 0.0
    %v154 = vsel %vm134, %v150, 0.0
    %v155 = vsel %vm135, %v150, 0.0
    %v156 = vsel %vm136, %v150, 0.0
    %v157 = vsel %vm137, %v150, 0.0
    %v158 = vsel %vm138, %v150, 0.0
    %v159 = vsel %vm139, %v150, 0.0
    %v160 = vsel %vm140, %v150, 0.0
    %v161 = vsel %vm141, %v150, 0.0
    %v162 = vsel %vm142, %v150, 0.0
    %v163 = vsel %vm143, %v150, 0.0
    %v164 = vsel %vm144, %v150, 0.0
    %v165 = vsel %vm145, %v150, 0.0
    %v166 = vsel %vm146, %v150, 0.0
    %v167 = vadd.f32 %v151, 0.0
    %v168 = vadd.f32 %v152, 0.0
    %v169 = vadd.f32 %v153, 0.0
    %v170 = vadd.f32 %v154, 0.0
    %v171 = vadd.f32 %v155, 0.0
    %v172 = vadd.f32 %v156, 0.0
    %v173 = vadd.f32 %v157, 0.0
    %v174 = vadd.f32 %v158, 0.0
    %v175 = vadd.f32 %v159, 0.0
    %v176 = vadd.f32 %v160, 0.0
    %v177 = vadd.f32 %v161, 0.0
    %v178 = vadd.f32 %v162, 0.0
    %v179 = vadd.f32 %v163, 0.0
    %v180 = vadd.f32 %v164, 0.0
    %v181 = vadd.f32 %v165, 0.0
    %v182 = vadd.f32 %v166, 0.0
    %v183 = vadd.s32 %v59, 1
    %vm184 = vcmp.ge.s32.totalorder %v183, 0
    %vm185 = vcmp.lt.s32.totalorder %v183, 8
    %vm186 = vmand %vm184, %vm185
    %vm187 = vmand %vm186, %vm86
    %vm188 = vmand %vm187, %vm90
    %vm189 = vmand %vm188, %vm95
    %vm190 = vmand %vm189, %vm100
    %v191 = vmul.f32 %v57, %v103
    %v192 = vmul.f32 %v191, %v107
    %v193 = vsel %vm190, %v192, 0.0
    %vm194 = vcmp.gt.s32.totalorder %v183, 0
    %v195 = vsel %vm194, %v183, 0
    %vm196 = vcmp.lt.s32.totalorder %v195, 7
    %v197 = vsel %vm196, %v195, 7
    %v198 = vrot.slane %v197, 6
    %v199 = vadd.s32 %v122, %v198
    %v200 = vsub.s32 %v199, %v125
    %v201 = vlaneseq
    %v202 = vshrl.u32 %v201, 7
    %v203 = vsub.s32 2, %v202
    %v204 = vrot.slane %v200, %v203
    %vm205 = vcmp.eq.s32.totalorder %v62, %v204
    %vm206 = vcmp.eq.s32.totalorder %v63, %v204
    %vm207 = vcmp.eq.s32.totalorder %v64, %v204
    %vm208 = vcmp.eq.s32.totalorder %v65, %v204
    %vm209 = vcmp.eq.s32.totalorder %v66, %v204
    %vm210 = vcmp.eq.s32.totalorder %v67, %v204
    %vm211 = vcmp.eq.s32.totalorder %v68, %v204
    %vm212 = vcmp.eq.s32.totalorder %v69, %v204
    %vm213 = vcmp.eq.s32.totalorder %v70, %v204
    %vm214 = vcmp.eq.s32.totalorder %v71, %v204
    %vm215 = vcmp.eq.s32.totalorder %v72, %v204
    %vm216 = vcmp.eq.s32.totalorder %v73, %v204
    %vm217 = vcmp.eq.s32.totalorder %v74, %v204
    %vm218 = vcmp.eq.s32.totalorder %v75, %v204
    %vm219 = vcmp.eq.s32.totalorder %v76, %v204
    %vm220 = vcmp.eq.s32.totalorder %v77, %v204
    %v221 = vlaneseq
    %v222 = vshrl.u32 %v221, 7
    %v223 = vsub.s32 0, %v222
    %v224 = vrot.slane %v193, %v223
    %v225 = vsel %vm205, %v224, 0.0
    %v226 = vsel %vm206, %v224, 0.0
    %v227 = vsel %vm207, %v224, 0.0
    %v228 = vsel %vm208, %v224, 0.0
    %v229 = vsel %vm209, %v224, 0.0
    %v230 = vsel %vm210, %v224, 0.0
    %v231 = vsel %vm211, %v224, 0.0
    %v232 = vsel %vm212, %v224, 0.0
    %v233 = vsel %vm213, %v224, 0.0
    %v234 = vsel %vm214, %v224, 0.0
    %v235 = vsel %vm215, %v224, 0.0
    %v236 = vsel %vm216, %v224, 0.0
    %v237 = vsel %vm217, %v224, 0.0
    %v238 = vsel %vm218, %v224, 0.0
    %v239 = vsel %vm219, %v224, 0.0
    %v240 = vsel %vm220, %v224, 0.0
    %v241 = vadd.f32 %v167, %v225
    %v242 = vadd.f32 %v168, %v226
    %v243 = vadd.f32 %v169, %v227
    %v244 = vadd.f32 %v170, %v228
    %v245 = vadd.f32 %v171, %v229
    %v246 = vadd.f32 %v172, %v230
    %v247 = vadd.f32 %v173, %v231
    %v248 = vadd.f32 %v174, %v232
    %v249 = vadd.f32 %v175, %v233
    %v250 = vadd.f32 %v176, %v234
    %v251 = vadd.f32 %v177, %v235
    %v252 = vadd.f32 %v178, %v236
    %v253 = vadd.f32 %v179, %v237
    %v254 = vadd.f32 %v180, %v238
    %v255 = vadd.f32 %v181, %v239
    %v256 = vadd.f32 %v182, %v240
    %v257 = vsel %vm184, 1, 0
    %v258 = vrot.slane %v257, 1
    %vm259 = vcmp.ne.s32.totalorder %v258, 0
    %vm260 = vmand %vm83, %vm259
    %v261 = vsel %vm185, 1, 0
    %v262 = vrot.slane %v261, 1
    %vm263 = vcmp.ne.s32.totalorder %v262, 0
    %vm264 = vmand %vm260, %vm263
    %vm265 = vmand %vm264, %vm95
    %vm266 = vmand %vm265, %vm100
    %v268 = vrot.slane %v57, 1
    %v270 = vmul.f32 %v80, %v268
    %v271 = vmul.f32 %v270, %v107
    %v272 = vsel %vm266, %v271, 0.0
    %v273 = vmul.u32 %v197, 8
    %v274 = vrot.slane %v273, 7
    %v275 = vadd.s32 %v115, %v274
    %v276 = vadd.s32 %v275, %v123
    %v277 = vsub.s32 %v276, %v125
    %v278 = vlaneseq
    %v279 = vshrl.u32 %v278, 7
    %v280 = vsub.s32 2, %v279
    %v281 = vrot.slane %v277, %v280
    %vm282 = vcmp.eq.s32.totalorder %v62, %v281
    %vm283 = vcmp.eq.s32.totalorder %v63, %v281
    %vm284 = vcmp.eq.s32.totalorder %v64, %v281
    %vm285 = vcmp.eq.s32.totalorder %v65, %v281
    %vm286 = vcmp.eq.s32.totalorder %v66, %v281
    %vm287 = vcmp.eq.s32.totalorder %v67, %v281
    %vm288 = vcmp.eq.s32.totalorder %v68, %v281
    %vm289 = vcmp.eq.s32.totalorder %v69, %v281
    %vm290 = vcmp.eq.s32.totalorder %v70, %v281
    %vm291 = vcmp.eq.s32.totalorder %v71, %v281
    %vm292 = vcmp.eq.s32.totalorder %v72, %v281
    %vm293 = vcmp.eq.s32.totalorder %v73, %v281
    %vm294 = vcmp.eq.s32.totalorder %v74, %v281
    %vm295 = vcmp.eq.s32.totalorder %v75, %v281
    %vm296 = vcmp.eq.s32.totalorder %v76, %v281
    %vm297 = vcmp.eq.s32.totalorder %v77, %v281
    %v298 = vlaneseq
    %v299 = vshrl.u32 %v298, 7
    %v300 = vsub.s32 0, %v299
    %v301 = vrot.slane %v272, %v300
    %v302 = vsel %vm282, %v301, 0.0
    %v303 = vsel %vm283, %v301, 0.0
    %v304 = vsel %vm284, %v301, 0.0
    %v305 = vsel %vm285, %v301, 0.0
    %v306 = vsel %vm286, %v301, 0.0
    %v307 = vsel %vm287, %v301, 0.0
    %v308 = vsel %vm288, %v301, 0.0
    %v309 = vsel %vm289, %v301, 0.0
    %v310 = vsel %vm290, %v301, 0.0
    %v311 = vsel %vm291, %v301, 0.0
    %v312 = vsel %vm292, %v301, 0.0
    %v313 = vsel %vm293, %v301, 0.0
    %v314 = vsel %vm294, %v301, 0.0
    %v315 = vsel %vm295, %v301, 0.0
    %v316 = vsel %vm296, %v301, 0.0
    %v317 = vsel %vm297, %v301, 0.0
    %v318 = vadd.f32 %v241, %v302
    %v319 = vadd.f32 %v242, %v303
    %v320 = vadd.f32 %v243, %v304
    %v321 = vadd.f32 %v244, %v305
    %v322 = vadd.f32 %v245, %v306
    %v323 = vadd.f32 %v246, %v307
    %v324 = vadd.f32 %v247, %v308
    %v325 = vadd.f32 %v248, %v309
    %v326 = vadd.f32 %v249, %v310
    %v327 = vadd.f32 %v250, %v311
    %v328 = vadd.f32 %v251, %v312
    %v329 = vadd.f32 %v252, %v313
    %v330 = vadd.f32 %v253, %v314
    %v331 = vadd.f32 %v254, %v315
    %v332 = vadd.f32 %v255, %v316
    %v333 = vadd.f32 %v256, %v317
    %vm334 = vmand %vm186, %vm259
    %vm335 = vmand %vm334, %vm263
    %vm336 = vmand %vm335, %vm95
    %vm337 = vmand %vm336, %vm100
    %v338 = vmul.f32 %v57, %v268
    %v339 = vmul.f32 %v338, %v107
    %v340 = vsel %vm337, %v339, 0.0
    %v341 = vadd.s32 %v275, %v198
    %v342 = vsub.s32 %v341, %v125
    %v343 = vlaneseq
    %v344 = vshrl.u32 %v343, 7
    %v345 = vsub.s32 2, %v344
    %v346 = vrot.slane %v342, %v345
    %vm347 = vcmp.eq.s32.totalorder %v62, %v346
    %vm348 = vcmp.eq.s32.totalorder %v63, %v346
    %vm349 = vcmp.eq.s32.totalorder %v64, %v346
    %vm350 = vcmp.eq.s32.totalorder %v65, %v346
    %vm351 = vcmp.eq.s32.totalorder %v66, %v346
    %vm352 = vcmp.eq.s32.totalorder %v67, %v346
    %vm353 = vcmp.eq.s32.totalorder %v68, %v346
    %vm354 = vcmp.eq.s32.totalorder %v69, %v346
    %vm355 = vcmp.eq.s32.totalorder %v70, %v346
    %vm356 = vcmp.eq.s32.totalorder %v71, %v346
    %vm357 = vcmp.eq.s32.totalorder %v72, %v346
    %vm358 = vcmp.eq.s32.totalorder %v73, %v346
    %vm359 = vcmp.eq.s32.totalorder %v74, %v346
    %vm360 = vcmp.eq.s32.totalorder %v75, %v346
    %vm361 = vcmp.eq.s32.totalorder %v76, %v346
    %vm362 = vcmp.eq.s32.totalorder %v77, %v346
    %v363 = vlaneseq
    %v364 = vshrl.u32 %v363, 7
    %v365 = vsub.s32 0, %v364
    %v366 = vrot.slane %v340, %v365
    %v367 = vsel %vm347, %v366, 0.0
    %v368 = vsel %vm348, %v366, 0.0
    %v369 = vsel %vm349, %v366, 0.0
    %v370 = vsel %vm350, %v366, 0.0
    %v371 = vsel %vm351, %v366, 0.0
    %v372 = vsel %vm352, %v366, 0.0
    %v373 = vsel %vm353, %v366, 0.0
    %v374 = vsel %vm354, %v366, 0.0
    %v375 = vsel %vm355, %v366, 0.0
    %v376 = vsel %vm356, %v366, 0.0
    %v377 = vsel %vm357, %v366, 0.0
    %v378 = vsel %vm358, %v366, 0.0
    %v379 = vsel %vm359, %v366, 0.0
    %v380 = vsel %vm360, %v366, 0.0
    %v381 = vsel %vm361, %v366, 0.0
    %v382 = vsel %vm362, %v366, 0.0
    %v383 = vadd.f32 %v318, %v367
    %v384 = vadd.f32 %v319, %v368
    %v385 = vadd.f32 %v320, %v369
    %v386 = vadd.f32 %v321, %v370
    %v387 = vadd.f32 %v322, %v371
    %v388 = vadd.f32 %v323, %v372
    %v389 = vadd.f32 %v324, %v373
    %v390 = vadd.f32 %v325, %v374
    %v391 = vadd.f32 %v326, %v375
    %v392 = vadd.f32 %v327, %v376
    %v393 = vadd.f32 %v328, %v377
    %v394 = vadd.f32 %v329, %v378
    %v395 = vadd.f32 %v330, %v379
    %v396 = vadd.f32 %v331, %v380
    %v397 = vadd.f32 %v332, %v381
    %v398 = vadd.f32 %v333, %v382
    %v399 = vadd.s32 %v60, 1
    %vm400 = vcmp.ge.s32.totalorder %v399, 0
    %v401 = vsel %vm400, 1, 0
    %v402 = vrot.slane %v401, 2
    %vm403 = vcmp.ne.s32.totalorder %v402, 0
    %vm404 = vmand %vm91, %vm403
    %vm405 = vcmp.lt.s32.totalorder %v399, 2
    %v406 = vsel %vm405, 1, 0
    %v407 = vrot.slane %v406, 2
    %vm408 = vcmp.ne.s32.totalorder %v407, 0
    %vm409 = vmand %vm404, %vm408
    %v411 = vrot.slane %v58, 2
    %v413 = vmul.f32 %v105, %v411
    %v414 = vsel %vm409, %v413, 0.0
    %vm415 = vcmp.gt.s32.totalorder %v399, 0
    %v416 = vsel %vm415, %v399, 0
    %vm417 = vcmp.lt.s32.totalorder %v416, 1
    %v418 = vsel %vm417, %v416, 1
    %v419 = vmul.u32 %v418, 64
    %v420 = vadd.s32 %v419, %v121
    %v421 = vadd.s32 %v420, %v123
    %v422 = vsub.s32 %v421, %v125
    %v423 = vlaneseq
    %v424 = vshrl.u32 %v423, 7
    %v425 = vsub.s32 2, %v424
    %v426 = vrot.slane %v422, %v425
    %vm427 = vcmp.eq.s32.totalorder %v62, %v426
    %vm428 = vcmp.eq.s32.totalorder %v63, %v426
    %vm429 = vcmp.eq.s32.totalorder %v64, %v426
    %vm430 = vcmp.eq.s32.totalorder %v65, %v426
    %vm431 = vcmp.eq.s32.totalorder %v66, %v426
    %vm432 = vcmp.eq.s32.totalorder %v67, %v426
    %vm433 = vcmp.eq.s32.totalorder %v68, %v426
    %vm434 = vcmp.eq.s32.totalorder %v69, %v426
    %vm435 = vcmp.eq.s32.totalorder %v70, %v426
    %vm436 = vcmp.eq.s32.totalorder %v71, %v426
    %vm437 = vcmp.eq.s32.totalorder %v72, %v426
    %vm438 = vcmp.eq.s32.totalorder %v73, %v426
    %vm439 = vcmp.eq.s32.totalorder %v74, %v426
    %vm440 = vcmp.eq.s32.totalorder %v75, %v426
    %vm441 = vcmp.eq.s32.totalorder %v76, %v426
    %vm442 = vcmp.eq.s32.totalorder %v77, %v426
    %v443 = vlaneseq
    %v444 = vshrl.u32 %v443, 7
    %v445 = vsub.s32 0, %v444
    %v446 = vrot.slane %v414, %v445
    %v447 = vsel %vm427, %v446, 0.0
    %v448 = vsel %vm428, %v446, 0.0
    %v449 = vsel %vm429, %v446, 0.0
    %v450 = vsel %vm430, %v446, 0.0
    %v451 = vsel %vm431, %v446, 0.0
    %v452 = vsel %vm432, %v446, 0.0
    %v453 = vsel %vm433, %v446, 0.0
    %v454 = vsel %vm434, %v446, 0.0
    %v455 = vsel %vm435, %v446, 0.0
    %v456 = vsel %vm436, %v446, 0.0
    %v457 = vsel %vm437, %v446, 0.0
    %v458 = vsel %vm438, %v446, 0.0
    %v459 = vsel %vm439, %v446, 0.0
    %v460 = vsel %vm440, %v446, 0.0
    %v461 = vsel %vm441, %v446, 0.0
    %v462 = vsel %vm442, %v446, 0.0
    %v463 = vadd.f32 %v383, %v447
    %v464 = vadd.f32 %v384, %v448
    %v465 = vadd.f32 %v385, %v449
    %v466 = vadd.f32 %v386, %v450
    %v467 = vadd.f32 %v387, %v451
    %v468 = vadd.f32 %v388, %v452
    %v469 = vadd.f32 %v389, %v453
    %v470 = vadd.f32 %v390, %v454
    %v471 = vadd.f32 %v391, %v455
    %v472 = vadd.f32 %v392, %v456
    %v473 = vadd.f32 %v393, %v457
    %v474 = vadd.f32 %v394, %v458
    %v475 = vadd.f32 %v395, %v459
    %v476 = vadd.f32 %v396, %v460
    %v477 = vadd.f32 %v397, %v461
    %v478 = vadd.f32 %v398, %v462
    %vm479 = vmand %vm188, %vm403
    %vm480 = vmand %vm479, %vm408
    %v481 = vmul.f32 %v191, %v411
    %v482 = vsel %vm480, %v481, 0.0
    %v483 = vadd.s32 %v420, %v198
    %v484 = vsub.s32 %v483, %v125
    %v485 = vlaneseq
    %v486 = vshrl.u32 %v485, 7
    %v487 = vsub.s32 2, %v486
    %v488 = vrot.slane %v484, %v487
    %vm489 = vcmp.eq.s32.totalorder %v62, %v488
    %vm490 = vcmp.eq.s32.totalorder %v63, %v488
    %vm491 = vcmp.eq.s32.totalorder %v64, %v488
    %vm492 = vcmp.eq.s32.totalorder %v65, %v488
    %vm493 = vcmp.eq.s32.totalorder %v66, %v488
    %vm494 = vcmp.eq.s32.totalorder %v67, %v488
    %vm495 = vcmp.eq.s32.totalorder %v68, %v488
    %vm496 = vcmp.eq.s32.totalorder %v69, %v488
    %vm497 = vcmp.eq.s32.totalorder %v70, %v488
    %vm498 = vcmp.eq.s32.totalorder %v71, %v488
    %vm499 = vcmp.eq.s32.totalorder %v72, %v488
    %vm500 = vcmp.eq.s32.totalorder %v73, %v488
    %vm501 = vcmp.eq.s32.totalorder %v74, %v488
    %vm502 = vcmp.eq.s32.totalorder %v75, %v488
    %vm503 = vcmp.eq.s32.totalorder %v76, %v488
    %vm504 = vcmp.eq.s32.totalorder %v77, %v488
    %v505 = vlaneseq
    %v506 = vshrl.u32 %v505, 7
    %v507 = vsub.s32 0, %v506
    %v508 = vrot.slane %v482, %v507
    %v509 = vsel %vm489, %v508, 0.0
    %v510 = vsel %vm490, %v508, 0.0
    %v511 = vsel %vm491, %v508, 0.0
    %v512 = vsel %vm492, %v508, 0.0
    %v513 = vsel %vm493, %v508, 0.0
    %v514 = vsel %vm494, %v508, 0.0
    %v515 = vsel %vm495, %v508, 0.0
    %v516 = vsel %vm496, %v508, 0.0
    %v517 = vsel %vm497, %v508, 0.0
    %v518 = vsel %vm498, %v508, 0.0
    %v519 = vsel %vm499, %v508, 0.0
    %v520 = vsel %vm500, %v508, 0.0
    %v521 = vsel %vm501, %v508, 0.0
    %v522 = vsel %vm502, %v508, 0.0
    %v523 = vsel %vm503, %v508, 0.0
    %v524 = vsel %vm504, %v508, 0.0
    %v525 = vadd.f32 %v463, %v509
    %v526 = vadd.f32 %v464, %v510
    %v527 = vadd.f32 %v465, %v511
    %v528 = vadd.f32 %v466, %v512
    %v529 = vadd.f32 %v467, %v513
    %v530 = vadd.f32 %v468, %v514
    %v531 = vadd.f32 %v469, %v515
    %v532 = vadd.f32 %v470, %v516
    %v533 = vadd.f32 %v471, %v517
    %v534 = vadd.f32 %v472, %v518
    %v535 = vadd.f32 %v473, %v519
    %v536 = vadd.f32 %v474, %v520
    %v537 = vadd.f32 %v475, %v521
    %v538 = vadd.f32 %v476, %v522
    %v539 = vadd.f32 %v477, %v523
    %v540 = vadd.f32 %v478, %v524
    %vm541 = vmand %vm264, %vm403
    %vm542 = vmand %vm541, %vm408
    %v543 = vmul.f32 %v270, %v411
    %v544 = vsel %vm542, %v543, 0.0
    %v545 = vadd.s32 %v419, %v274
    %v546 = vadd.s32 %v545, %v123
    %v547 = vsub.s32 %v546, %v125
    %v548 = vlaneseq
    %v549 = vshrl.u32 %v548, 7
    %v550 = vsub.s32 2, %v549
    %v551 = vrot.slane %v547, %v550
    %vm552 = vcmp.eq.s32.totalorder %v62, %v551
    %vm553 = vcmp.eq.s32.totalorder %v63, %v551
    %vm554 = vcmp.eq.s32.totalorder %v64, %v551
    %vm555 = vcmp.eq.s32.totalorder %v65, %v551
    %vm556 = vcmp.eq.s32.totalorder %v66, %v551
    %vm557 = vcmp.eq.s32.totalorder %v67, %v551
    %vm558 = vcmp.eq.s32.totalorder %v68, %v551
    %vm559 = vcmp.eq.s32.totalorder %v69, %v551
    %vm560 = vcmp.eq.s32.totalorder %v70, %v551
    %vm561 = vcmp.eq.s32.totalorder %v71, %v551
    %vm562 = vcmp.eq.s32.totalorder %v72, %v551
    %vm563 = vcmp.eq.s32.totalorder %v73, %v551
    %vm564 = vcmp.eq.s32.totalorder %v74, %v551
    %vm565 = vcmp.eq.s32.totalorder %v75, %v551
    %vm566 = vcmp.eq.s32.totalorder %v76, %v551
    %vm567 = vcmp.eq.s32.totalorder %v77, %v551
    %v568 = vlaneseq
    %v569 = vshrl.u32 %v568, 7
    %v570 = vsub.s32 0, %v569
    %v571 = vrot.slane %v544, %v570
    %v572 = vsel %vm552, %v571, 0.0
    %v573 = vsel %vm553, %v571, 0.0
    %v574 = vsel %vm554, %v571, 0.0
    %v575 = vsel %vm555, %v571, 0.0
    %v576 = vsel %vm556, %v571, 0.0
    %v577 = vsel %vm557, %v571, 0.0
    %v578 = vsel %vm558, %v571, 0.0
    %v579 = vsel %vm559, %v571, 0.0
    %v580 = vsel %vm560, %v571, 0.0
    %v581 = vsel %vm561, %v571, 0.0
    %v582 = vsel %vm562, %v571, 0.0
    %v583 = vsel %vm563, %v571, 0.0
    %v584 = vsel %vm564, %v571, 0.0
    %v585 = vsel %vm565, %v571, 0.0
    %v586 = vsel %vm566, %v571, 0.0
    %v587 = vsel %vm567, %v571, 0.0
    %v588 = vadd.f32 %v525, %v572
    %v589 = vadd.f32 %v526, %v573
    %v590 = vadd.f32 %v527, %v574
    %v591 = vadd.f32 %v528, %v575
    %v592 = vadd.f32 %v529, %v576
    %v593 = vadd.f32 %v530, %v577
    %v594 = vadd.f32 %v531, %v578
    %v595 = vadd.f32 %v532, %v579
    %v596 = vadd.f32 %v533, %v580
    %v597 = vadd.f32 %v534, %v581
    %v598 = vadd.f32 %v535, %v582
    %v599 = vadd.f32 %v536, %v583
    %v600 = vadd.f32 %v537, %v584
    %v601 = vadd.f32 %v538, %v585
    %v602 = vadd.f32 %v539, %v586
    %v603 = vadd.f32 %v540, %v587
    %vm604 = vmand %vm335, %vm403
    %vm605 = vmand %vm604, %vm408
    %v606 = vmul.f32 %v338, %v411
    %v607 = vsel %vm605, %v606, 0.0
    %v608 = vadd.s32 %v545, %v198
    %v609 = vsub.s32 %v608, %v125
    %v610 = vlaneseq
    %v611 = vshrl.u32 %v610, 7
    %v612 = vsub.s32 2, %v611
    %v613 = vrot.slane %v609, %v612
    %vm614 = vcmp.eq.s32.totalorder %v62, %v613
    %vm615 = vcmp.eq.s32.totalorder %v63, %v613
    %vm616 = vcmp.eq.s32.totalorder %v64, %v613
    %vm617 = vcmp.eq.s32.totalorder %v65, %v613
    %vm618 = vcmp.eq.s32.totalorder %v66, %v613
    %vm619 = vcmp.eq.s32.totalorder %v67, %v613
    %vm620 = vcmp.eq.s32.totalorder %v68, %v613
    %vm621 = vcmp.eq.s32.totalorder %v69, %v613
    %vm622 = vcmp.eq.s32.totalorder %v70, %v613
    %vm623 = vcmp.eq.s32.totalorder %v71, %v613
    %vm624 = vcmp.eq.s32.totalorder %v72, %v613
    %vm625 = vcmp.eq.s32.totalorder %v73, %v613
    %vm626 = vcmp.eq.s32.totalorder %v74, %v613
    %vm627 = vcmp.eq.s32.totalorder %v75, %v613
    %vm628 = vcmp.eq.s32.totalorder %v76, %v613
    %vm629 = vcmp.eq.s32.totalorder %v77, %v613
    %v630 = vlaneseq
    %v631 = vshrl.u32 %v630, 7
    %v632 = vsub.s32 0, %v631
    %v633 = vrot.slane %v607, %v632
    %v634 = vsel %vm614, %v633, 0.0
    %v635 = vsel %vm615, %v633, 0.0
    %v636 = vsel %vm616, %v633, 0.0
    %v637 = vsel %vm617, %v633, 0.0
    %v638 = vsel %vm618, %v633, 0.0
    %v639 = vsel %vm619, %v633, 0.0
    %v640 = vsel %vm620, %v633, 0.0
    %v641 = vsel %vm621, %v633, 0.0
    %v642 = vsel %vm622, %v633, 0.0
    %v643 = vsel %vm623, %v633, 0.0
    %v644 = vsel %vm624, %v633, 0.0
    %v645 = vsel %vm625, %v633, 0.0
    %v646 = vsel %vm626, %v633, 0.0
    %v647 = vsel %vm627, %v633, 0.0
    %v648 = vsel %vm628, %v633, 0.0
    %v649 = vsel %vm629, %v633, 0.0
    %v650 = vadd.f32 %v588, %v634
    %v651 = vadd.f32 %v589, %v635
    %v652 = vadd.f32 %v590, %v636
    %v653 = vadd.f32 %v591, %v637
    %v654 = vadd.f32 %v592, %v638
    %v655 = vadd.f32 %v593, %v639
    %v656 = vadd.f32 %v594, %v640
    %v657 = vadd.f32 %v595, %v641
    %v658 = vadd.f32 %v596, %v642
    %v659 = vadd.f32 %v597, %v643
    %v660 = vadd.f32 %v598, %v644
    %v661 = vadd.f32 %v599, %v645
    %v662 = vadd.f32 %v600, %v646
    %v663 = vadd.f32 %v601, %v647
    %v664 = vadd.f32 %v602, %v648
    %v665 = vadd.f32 %v603, %v649
    %v666 = vld [vmem:[#allocation2] sm:$0xff]
    %v667 = vld [vmem:[#allocation2 + $0x8] sm:$0xff]
    %v668 = vld [vmem:[#allocation6] sm:$0xff]
    %v669 = vld [vmem:[#allocation6 + $0x8] sm:$0xff]
    %670 = vmatprep.subr.mxu0 0.0
    %671 = vmatpush1.msra.mxu0 %v650
    %672 = vmatprep.subr.mxu0 0.0
    %673 = vmatpush1.msra.mxu0 %v651
    %674 = vmatprep.subr.mxu0 0.0
    %675 = vmatpush1.msra.mxu0 %v652
    %676 = vmatprep.subr.mxu0 0.0
    %677 = vmatpush1.msra.mxu0 %v653
    %678 = vmatprep.subr.mxu0 0.0
    %679 = vmatpush1.msra.mxu0 %v654
    %680 = vmatprep.subr.mxu0 0.0
    %681 = vmatpush1.msra.mxu0 %v655
    %682 = vmatprep.subr.mxu0 0.0
    %683 = vmatpush1.msra.mxu0 %v656
    %684 = vmatprep.subr.mxu0 0.0
    %685 = vmatpush1.msra.mxu0 %v657
    %686 = vmatprep.subr.mxu0 0.0
    %687 = vmatpush1.msra.mxu0 %v658
    %688 = vmatprep.subr.mxu0 0.0
    %689 = vmatpush1.msra.mxu0 %v659
    %690 = vmatprep.subr.mxu0 0.0
    %691 = vmatpush1.msra.mxu0 %v660
    %692 = vmatprep.subr.mxu0 0.0
    %693 = vmatpush1.msra.mxu0 %v661
    %694 = vmatprep.subr.mxu0 0.0
    %695 = vmatpush1.msra.mxu0 %v662
    %696 = vmatprep.subr.mxu0 0.0
    %697 = vmatpush1.msra.mxu0 %v663
    %698 = vmatprep.subr.mxu0 0.0
    %699 = vmatpush1.msra.mxu0 %v664
    %700 = vmatprep.subr.mxu0 0.0
    %701 = vmatpush1.msra.mxu0 %v665
    %702 = vmatprep.subr.mxu0 0.0
    %703 = vmatpush1.msra.mxu0 0.0
    %704 = vmatprep.subr.mxu0 0.0
    %705 = vmatpush1.msra.mxu0 0.0
    %706 = vmatprep.subr.mxu0 0.0
    %707 = vmatpush1.msra.mxu0 0.0
    %708 = vmatprep.subr.mxu0 0.0
    %709 = vmatpush1.msra.mxu0 0.0
    %710 = vmatprep.subr.mxu0 0.0
    %711 = vmatpush1.msra.mxu0 0.0
    %712 = vmatprep.subr.mxu0 0.0
    %713 = vmatpush1.msra.mxu0 0.0
    %714 = vmatprep.subr.mxu0 0.0
    %715 = vmatpush1.msra.mxu0 0.0
    %716 = vmatprep.subr.mxu0 0.0
    %717 = vmatpush1.msra.mxu0 0.0
    %718 = vmatprep.subr.mxu0 0.0
    %719 = vmatpush1.msra.mxu0 0.0
    %720 = vmatprep.subr.mxu0 0.0
    %721 = vmatpush1.msra.mxu0 0.0
    %722 = vmatprep.subr.mxu0 0.0
    %723 = vmatpush1.msra.mxu0 0.0
    %724 = vmatprep.subr.mxu0 0.0
    %725 = vmatpush1.msra.mxu0 0.0
    %726 = vmatprep.subr.mxu0 0.0
    %727 = vmatpush1.msra.mxu0 0.0
    %728 = vmatprep.subr.mxu0 0.0
    %729 = vmatpush1.msra.mxu0 0.0
    %730 = vmatprep.subr.mxu0 0.0
    %731 = vmatpush1.msra.mxu0 0.0
    %732 = vmatprep.subr.mxu0 0.0
    %733 = vmatpush1.msra.mxu0 0.0
    %734 = vmatprep.mubr.f32.mxu0 0.0
    %735 = vmatmul.mubr.f32.gmra.mrb[0].mxu0 %v668
    %v736 = vpop.f32.mrb[0].mxu0
    %v737 = vadd.f32 0.0, %v736
    %v738 = vpop.f32.mrb[0].mxu0
    %739 = vmatprep.mubr.f32.mxu0 0.0
    %740 = vmatmul.mubr.f32.gmra.mrb[0].mxu0 %v669
    %v741 = vpop.f32.mrb[0].mxu0
    %v742 = vadd.f32 0.0, %v741
    %v743 = vpop.f32.mrb[0].mxu0
    %744 = vdwg.mxu0
    %v745 = vadd.f32 %v666, %v737
    %v746 = vadd.f32 %v667, %v742
    %747 = vst [vmem:[#allocation2] sm:$0xff] %v745
    %748 = vst [vmem:[#allocation2 + $0x8] sm:$0xff] %v746
    // Predicated region
    $region22: #{tpu_custom_call.1} parent=1 // pred_check
      %p749 = pneg %p38
    $region23: #{tpu_custom_call.1} parent=1 // pred_check_branch
      %751 = sbr.rel (%p749) target = $region25
    $region24: #{tpu_custom_call.1} parent=1 // pred_region
      %v752 = vld [vmem:[#allocation2] sm:$0xff]
      %v753 = vld [vmem:[#allocation2 + $0x8] sm:$0xff]
      %vm754 = vcmp.eq.s32.totalorder %v62, 0
      %vm755 = vcmp.eq.s32.totalorder %v63, 0
      %v756 = vlaneseq
      %v757 = vshrl.u32 %v756, 7
      %v758 = vsub.s32 3, %v757
      %v759 = vrot.slane %v44, %v758
      %v760 = vsel %vm754, %v759, %v752
      %v761 = vsel %vm755, %v759, %v753
      %vm762 = vcmp.eq.s32.totalorder %v62, 9
      %vm763 = vcmp.eq.s32.totalorder %v63, 9
      %v764 = vlaneseq
      %v765 = vshrl.u32 %v764, 7
      %v766 = vsub.s32 4, %v765
      %v767 = vrot.slane %v44, %v766
      %v768 = vsel %vm762, %v767, %v760
      %v769 = vsel %vm763, %v767, %v761
      %vm770 = vcmp.eq.s32.totalorder %v62, 10
      %vm771 = vcmp.eq.s32.totalorder %v63, 10
      %v772 = vlaneseq
      %v773 = vshrl.u32 %v772, 7
      %v774 = vsub.s32 5, %v773
      %v775 = vrot.slane %v44, %v774
      %v776 = vsel %vm770, %v775, %v768
      %v777 = vsel %vm771, %v775, %v769
      %778 = vst [vmem:[#allocation8] sm:$0xff] %v776
      %779 = vst [vmem:[#allocation8 + $0x8] sm:$0xff] %v777
    $region25: #{tpu_custom_call.1} parent=1 // pred_fallthru
      _
    // Predicated region
    $region26: #{tpu_custom_call.1} parent=1 // pred_check
      _
    $region27: #{tpu_custom_call.1} parent=1 // pred_check_branch
      %781 = sbr.rel (0) target = $region29
    $region28: #{tpu_custom_call.1} parent=1 // pred_region
      %s783 = ssub.s32 256, 256
      %784 = vsyncadd [#allocation5], %s783
      %s785 = sshll.u32 [#allocation8], 4
      %s786 = int_to_ptr.vmem [resolvable:$true] %s785
      %791 = dma.vmem_to_hbm [thread:$0]  %s786, 256, %s2, [#allocation5], 128, 128, 8
    $region29: #{tpu_custom_call.1} parent=1 // pred_fallthru
      _
    // Predicated region
    $region30: #{tpu_custom_call.1} parent=1 // pred_check
      _
    $region31: #{tpu_custom_call.1} parent=1 // pred_check_branch
      %793 = sbr.rel (0) target = $region33
    $region32: #{tpu_custom_call.1} parent=1 // pred_region
      %794 = dma.done [#allocation5], 256
    $region33: #{tpu_custom_call.1} parent=1 // pred_fallthru
      _
    %795 = vsyncpa [#allocation4], 1
    %796 = vsyncpa [#allocation7], 1
    %797 = vsyncpa [#allocation5], 1

</llo_original>
